<compile_context>
chip_gen: v6e
topology: v6e:2x2x1
jax: 0.10.0
libtpu: 0.0.40
codegen_flags: <defaults>
</compile_context>

<pallas_src>
import functools

import jax
import jax.numpy as jnp
from jax.experimental import pallas as pl
from jax.experimental.pallas import tpu as pltpu


def _round_up(n, m):
    return ((n + m - 1) // m) * m


def _pad2(a, r, c):
    if a.shape == (r, c):
        return a
    return jnp.pad(a, ((0, r - a.shape[0]), (0, c - a.shape[1])))


def _tpu_vmem_capacity_bytes():
    """Physical VMEM per core (v5e/v6e: 128 MiB, v7x: 64 MiB)."""
    try:
        return int(pltpu.get_tpu_info().vmem_capacity_bytes)
    except Exception:
        pass
    try:
        kind = jax.devices()[0].device_kind.lower()
        if "v7" in kind:
            return 64 << 20
    except Exception:
        pass
    return 128 << 20


def _feature_align():
    """MXU-friendly feature padding: 256 on v6e/v7x (256-wide MXU), else 128."""
    try:
        kind = jax.devices()[0].device_kind.lower()
        if "v6" in kind or "v7" in kind:
            return 256
    except Exception:
        pass
    return 128


def _resnet_block_kernel(x_ref, w13_ref, b1_ref, w2_ref, bz_ref,
                         g_ref, beta_ref, o_ref,
                         *, d_real, f_pad, f_chunk, mm_dtype):
    x = x_ref[...]
    xm = x if x.dtype == mm_dtype else x.astype(mm_dtype)   # MXU operand dtype

    if f_chunk >= f_pad:
        # Fused conv1+conv3: the shared LHS x is pushed to the MXU once.
        # hr columns [0, f_pad) = conv1 pre-activation, [f_pad, end) = shortcut.
        hr = jnp.dot(xm, w13_ref[...], preferred_element_type=jnp.float32)
        h = jnp.maximum(hr[:, :f_pad] + b1_ref[...], 0.0)
        z = hr[:, f_pad:] + jnp.dot(h.astype(mm_dtype), w2_ref[...],
                                    preferred_element_type=jnp.float32)
    else:
        # Large d_ff on tight-VMEM chips: chunk the hidden dim so the full
        # (tm, f_pad) f32 intermediate (and its bf16 copy) never materializes.
        z = jnp.dot(xm, w13_ref[:, f_pad:], preferred_element_type=jnp.float32)
        for c0 in range(0, f_pad, f_chunk):
            c1 = min(c0 + f_chunk, f_pad)
            hc = jnp.dot(xm, w13_ref[:, c0:c1],
                         preferred_element_type=jnp.float32)
            hc = jnp.maximum(hc + b1_ref[:, c0:c1], 0.0)
            z = z + jnp.dot(hc.astype(mm_dtype), w2_ref[c0:c1, :],
                            preferred_element_type=jnp.float32)

    z = z + bz_ref[...]          # folded (b2 + b3); padded columns stay 0

    # LayerNorm over the REAL d_model channels (eps=1e-5, biased variance).
    # Padded columns of z are exactly 0, so sums over the padded axis equal
    # the sums over the real channels.
    inv_d = 1.0 / d_real
    mean = jnp.sum(z, axis=-1, keepdims=True) * inv_d
    var = jnp.sum(z * z, axis=-1, keepdims=True) * inv_d - mean * mean
    var = jnp.maximum(var, 0.0)   # guard f32 cancellation -> negative variance
    zn = (z - mean) * jax.lax.rsqrt(var + 1e-5)
    # gamma/beta are 0 on padded columns -> padded output columns are 0.
    o_ref[...] = (zn * g_ref[...] + beta_ref[...]).astype(o_ref.dtype)


def resnet_block_type1(x, params, *, tm=256, mm_dtype=jnp.bfloat16):
    """x: (B, L, d_model). Returns (B, L, d_model) in x.dtype."""
    B, L, d_model = x.shape
    d_ff = params["w1"].shape[1]
    rows = B * L

    align = _feature_align()
    d_pad = _round_up(d_model, align)
    f_pad = _round_up(d_ff, align)
    vmem_cap = _tpu_vmem_capacity_bytes()

    tm = max(8, min(tm, _round_up(rows, 8)))
    # Ensure >= 2 grid steps so v7x's two TensorCores both get work (the extra
    # grid step is ~0.35 us on single-TC chips -> harmless).
    while tm > 8 and _round_up(rows, tm) // tm < 2:
        tm //= 2
    rows_pad = _round_up(rows, tm)

    # Hidden-dim chunking only when VMEM is tight (v7x) and d_ff is large.
    f_chunk = 1024 if (vmem_cap <= (80 << 20) and f_pad > 1024) else f_pad

    # Input slab: skip the pad entirely when already aligned (no extra HBM pass).
    x2 = x.reshape(rows, d_model)
    needs_pad = (rows_pad != rows) or (d_pad != d_model)
    if needs_pad:
        x2 = _pad2(x2, rows_pad, d_pad)

    # Weights fed to the MXU in bf16 (f32 accumulation inside the kernel);
    # biases / LayerNorm params stay f32.  conv1/conv3 weights are fused.
    w1 = _pad2(params["w1"], d_pad, f_pad)
    w3 = _pad2(params["w3"], d_pad, d_pad)
    w13 = jnp.concatenate([w1, w3], axis=1).astype(mm_dtype)    # (d_pad, f_pad+d_pad)
    b1 = _pad2(params["b1"], 1, f_pad).astype(jnp.float32)
    w2 = _pad2(params["w2"], f_pad, d_pad).astype(mm_dtype)
    bz = _pad2(params["b2"] + params["b3"], 1, d_pad).astype(jnp.float32)
    gamma = _pad2(params["gamma"], 1, d_pad).astype(jnp.float32)
    beta = _pad2(params["beta"], 1, d_pad).astype(jnp.float32)

    kernel = functools.partial(_resnet_block_kernel, d_real=float(d_model),
                               f_pad=f_pad, f_chunk=f_chunk, mm_dtype=mm_dtype)

    itemsize = jnp.dtype(x.dtype).itemsize
    w_itemsize = jnp.dtype(mm_dtype).itemsize

    def vmem_limit_for(weight_bufs):
        w_bytes = (d_pad * (f_pad + d_pad) + f_pad * d_pad) * w_itemsize
        small_bytes = (f_pad + 3 * d_pad) * 4
        io_bytes = 2 * 2 * tm * d_pad * itemsize             # x + out, 2-buffered
        if f_chunk >= f_pad:
            tmp_bytes = tm * ((f_pad + d_pad) * 4 + f_pad * 2 + d_pad * 12)
        else:
            tmp_bytes = tm * (f_chunk * 6 + d_pad * 16)
        est = weight_bufs * (w_bytes + small_bytes) + io_bytes + tmp_bytes + (2 << 20)
        # Leave headroom for compiler scratch / semaphores: ~82% of physical,
        # never above ~112 MiB (v5e/v6e) and ~52 MiB on v7x's 64 MiB.
        cap = min(int(vmem_cap * 0.82), 112 << 20)
        return int(min(max(est, 32 << 20), cap))

    def build(single_buffer_weights):
        kw = ({"pipeline_mode": pl.Buffered(1)} if single_buffer_weights else {})
        const = lambda i: (0, 0)
        in_specs = [
            pl.BlockSpec((tm, d_pad), lambda i: (i, 0)),            # x rows
            pl.BlockSpec((d_pad, f_pad + d_pad), const, **kw),      # [w1 | w3]
            pl.BlockSpec((1, f_pad), const, **kw),                  # b1
            pl.BlockSpec((f_pad, d_pad), const, **kw),              # w2
            pl.BlockSpec((1, d_pad), const, **kw),                  # b2 + b3
            pl.BlockSpec((1, d_pad), const, **kw),                  # gamma
            pl.BlockSpec((1, d_pad), const, **kw),                  # beta
        ]
        return pl.pallas_call(
            kernel,
            out_shape=jax.ShapeDtypeStruct((rows_pad, d_pad), x.dtype),
            grid_spec=pltpu.PrefetchScalarGridSpec(
                num_scalar_prefetch=0,
                grid=(rows_pad // tm,),
                in_specs=in_specs,
                out_specs=pl.BlockSpec((tm, d_pad), lambda i: (i, 0)),
            ),
            compiler_params=pltpu.CompilerParams(
                dimension_semantics=("parallel",),
                vmem_limit_bytes=vmem_limit_for(1 if single_buffer_weights else 2)),
        )

    args = (x2, w13, b1, w2, bz, gamma, beta)
    try:
        # Grid-invariant operands single-buffered (halves resident weight VMEM).
        out = build(True)(*args)
    except Exception:
        # Fallback if this Pallas version rejects Buffered(1) on these specs;
        # the VMEM limit is re-derived for 2x-resident weights.
        out = build(False)(*args)

    if needs_pad:
        out = out[:rows, :d_model]
    return out.reshape(B, L, d_model)


def init_params(key, d_model, d_ff):
    """Deterministic synthetic parameters.

    PyTorch Conv1d weight (out, in, 1) is stored transposed as (in, out) so
    the kernel uses plain row-major matmuls."""
    k1, k2, k3, k4, k5, k6 = jax.random.split(key, 6)
    s1 = 1.0 / jnp.sqrt(d_model)
    s2 = 1.0 / jnp.sqrt(d_ff)
    return {
        "w1": jax.random.uniform(k1, (d_model, d_ff), jnp.float32, -s1, s1),
        "b1": jax.random.uniform(k2, (1, d_ff), jnp.float32, -s1, s1),
        "w2": jax.random.uniform(k3, (d_ff, d_model), jnp.float32, -s2, s2),
        "b2": jax.random.uniform(k4, (1, d_model), jnp.float32, -s2, s2),
        "w3": jax.random.uniform(k5, (d_model, d_model), jnp.float32, -s1, s1),
        "b3": jax.random.uniform(k6, (1, d_model), jnp.float32, -s1, s1),
        "gamma": jnp.ones((1, d_model), jnp.float32),
        "beta": jnp.zeros((1, d_model), jnp.float32),
    }


def _reference_f32(x, p):
    """Pure-JAX f32 reference of the PyTorch forward (eval mode)."""
    h = jnp.maximum(x @ p["w1"] + p["b1"], 0.0)
    y = h @ p["w2"] + p["b2"]
    r = x @ p["w3"] + p["b3"]
    z = r + y
    mean = jnp.mean(z, axis=-1, keepdims=True)
    var = jnp.mean((z - mean) ** 2, axis=-1, keepdims=True)
    return (z - mean) / jnp.sqrt(var + 1e-5) * p["gamma"] + p["beta"]


def _reference_bf16(x, p, mm_dtype=jnp.bfloat16):
    """Mirrors the kernel's bf16-operand / f32-accumulate matmul path."""
    xm = x.astype(mm_dtype)
    w1 = p["w1"].astype(mm_dtype)
    w2 = p["w2"].astype(mm_dtype)
    w3 = p["w3"].astype(mm_dtype)
    h = jnp.maximum(jnp.dot(xm, w1, preferred_element_type=jnp.float32) + p["b1"], 0.0)
    y = jnp.dot(h.astype(mm_dtype), w2, preferred_element_type=jnp.float32)
    r = jnp.dot(xm, w3, preferred_element_type=jnp.float32)
    z = r + y + (p["b2"] + p["b3"])
    d = z.shape[-1]
    mean = jnp.sum(z, axis=-1, keepdims=True) / d
    var = jnp.maximum(jnp.sum(z * z, axis=-1, keepdims=True) / d - mean * mean, 0.0)
    return (z - mean) * jax.lax.rsqrt(var + 1e-5) * p["gamma"] + p["beta"]


if __name__ == "__main__":
    B, L, d_model, d_ff = 2, 8, 32, 64
    key = jax.random.PRNGKey(0)
    kx, kp = jax.random.split(key)
    x = jax.random.normal(kx, (B, L, d_model), jnp.float32)
    params = init_params(kp, d_model, d_ff)

    out = resnet_block_type1(x, params)
    jax.block_until_ready(out)
    assert out.shape == (B, L, d_model)

    # Tight check against a reference that mirrors the kernel's bf16 matmuls.
    ref16 = _reference_bf16(x, params)
    assert jnp.allclose(out, ref16, atol=5e-3, rtol=5e-3), "mismatch vs bf16 reference"

    # Looser check against the full-f32 PyTorch-equivalent forward.
    ref32 = _reference_f32(x, params)
    assert jnp.allclose(out, ref32, atol=5e-2, rtol=5e-2), "mismatch vs f32 reference"

    print("KERNEL_OK")
</pallas_src>

<mosaic_0001>
module attributes {stable_mosaic.version = 11 : i64} {
  func.func @_resnet_block_kernel(%arg0: i32, %arg1: memref<8x128xf32, #tpu.memory_space<vmem>>, %arg2: memref<128x256xbf16, #tpu.memory_space<vmem>>, %arg3: memref<1x128xf32, #tpu.memory_space<vmem>>, %arg4: memref<128x128xbf16, #tpu.memory_space<vmem>>, %arg5: memref<1x128xf32, #tpu.memory_space<vmem>>, %arg6: memref<1x128xf32, #tpu.memory_space<vmem>>, %arg7: memref<1x128xf32, #tpu.memory_space<vmem>>, %arg8: memref<8x128xf32, #tpu.memory_space<vmem>>) attributes {dimension_semantics = [#tpu.dimension_semantics<parallel>], iteration_bounds = array<i64: 2>, scalar_prefetch = 0 : i64, scratch_operands = 0 : i64, tpu.core_type = #tpu.core_type<tc>, window_params = [{transform_indices = @transform_0, window_bounds = array<i64: 8, 128>}, {pipeline_mode = #tpu.pipeline_mode<synchronous>, transform_indices = @transform_1, window_bounds = array<i64: 128, 256>}, {pipeline_mode = #tpu.pipeline_mode<synchronous>, transform_indices = @transform_2, window_bounds = array<i64: 1, 128>}, {pipeline_mode = #tpu.pipeline_mode<synchronous>, transform_indices = @transform_3, window_bounds = array<i64: 128, 128>}, {pipeline_mode = #tpu.pipeline_mode<synchronous>, transform_indices = @transform_4, window_bounds = array<i64: 1, 128>}, {pipeline_mode = #tpu.pipeline_mode<synchronous>, transform_indices = @transform_5, window_bounds = array<i64: 1, 128>}, {pipeline_mode = #tpu.pipeline_mode<synchronous>, transform_indices = @transform_6, window_bounds = array<i64: 1, 128>}, {transform_indices = @transform_7, window_bounds = array<i64: 8, 128>}]} {
    %c0 = arith.constant 0 : index
    %c0_0 = arith.constant 0 : index
    %0 = vector.load %arg1[%c0, %c0_0] : memref<8x128xf32, #tpu.memory_space<vmem>>, vector<8x128xf32>
    %1 = arith.truncf %0 : vector<8x128xf32> to vector<8x128xbf16>
    %c0_1 = arith.constant 0 : index
    %c0_2 = arith.constant 0 : index
    %2 = vector.load %arg2[%c0_1, %c0_2] : memref<128x256xbf16, #tpu.memory_space<vmem>>, vector<128x256xbf16>
    %cst = arith.constant dense<0.000000e+00> : vector<8x256xf32>
    %3 = tpu.matmul %1, %2, %cst {dimension_numbers = #tpu.dot_dimension_numbers<[1], [0], [0], [1], [0, 0, 1, 1], [], []>} : vector<8x128xbf16>, vector<128x256xbf16>, vector<8x256xf32> -> vector<8x256xf32>
    %4 = vector.extract_strided_slice %3 {offsets = [0, 0], sizes = [8, 128], strides = [1, 1]} : vector<8x256xf32> to vector<8x128xf32>
    %c0_3 = arith.constant 0 : index
    %c0_4 = arith.constant 0 : index
    %5 = vector.load %arg3[%c0_3, %c0_4] : memref<1x128xf32, #tpu.memory_space<vmem>>, vector<1x128xf32>
    %6 = vector.broadcast %5 : vector<1x128xf32> to vector<8x128xf32>
    %7 = arith.addf %4, %6 : vector<8x128xf32>
    %cst_5 = arith.constant 0.000000e+00 : f32
    %8 = vector.broadcast %cst_5 : f32 to vector<8x128xf32>
    %9 = arith.maximumf %7, %8 : vector<8x128xf32>
    %10 = vector.extract_strided_slice %3 {offsets = [0, 128], sizes = [8, 128], strides = [1, 1]} : vector<8x256xf32> to vector<8x128xf32>
    %11 = arith.truncf %9 : vector<8x128xf32> to vector<8x128xbf16>
    %c0_6 = arith.constant 0 : index
    %c0_7 = arith.constant 0 : index
    %12 = vector.load %arg4[%c0_6, %c0_7] : memref<128x128xbf16, #tpu.memory_space<vmem>>, vector<128x128xbf16>
    %cst_8 = arith.constant dense<0.000000e+00> : vector<8x128xf32>
    %13 = tpu.matmul %11, %12, %cst_8 {dimension_numbers = #tpu.dot_dimension_numbers<[1], [0], [0], [1], [0, 0, 1, 1], [], []>} : vector<8x128xbf16>, vector<128x128xbf16>, vector<8x128xf32> -> vector<8x128xf32>
    %14 = arith.addf %10, %13 : vector<8x128xf32>
    %c0_9 = arith.constant 0 : index
    %c0_10 = arith.constant 0 : index
    %15 = vector.load %arg5[%c0_9, %c0_10] : memref<1x128xf32, #tpu.memory_space<vmem>>, vector<1x128xf32>
    %16 = vector.broadcast %15 : vector<1x128xf32> to vector<8x128xf32>
    %17 = arith.addf %14, %16 : vector<8x128xf32>
    %cst_11 = arith.constant dense<0.000000e+00> : vector<8xf32>
    %18 = vector.multi_reduction <add>, %17, %cst_11 [1] : vector<8x128xf32> to vector<8xf32>
    %19 = vector.shape_cast %18 : vector<8xf32> to vector<8x1xf32>
    %cst_12 = arith.constant 3.125000e-02 : f32
    %20 = vector.broadcast %cst_12 : f32 to vector<8x1xf32>
    %21 = arith.mulf %19, %20 : vector<8x1xf32>
    %22 = arith.mulf %17, %17 : vector<8x128xf32>
    %cst_13 = arith.constant dense<0.000000e+00> : vector<8xf32>
    %23 = vector.multi_reduction <add>, %22, %cst_13 [1] : vector<8x128xf32> to vector<8xf32>
    %24 = vector.shape_cast %23 : vector<8xf32> to vector<8x1xf32>
    %cst_14 = arith.constant 3.125000e-02 : f32
    %25 = vector.broadcast %cst_14 : f32 to vector<8x1xf32>
    %26 = arith.mulf %24, %25 : vector<8x1xf32>
    %27 = arith.mulf %21, %21 : vector<8x1xf32>
    %28 = arith.subf %26, %27 : vector<8x1xf32>
    %cst_15 = arith.constant 0.000000e+00 : f32
    %29 = vector.broadcast %cst_15 : f32 to vector<8x1xf32>
    %30 = arith.maximumf %28, %29 : vector<8x1xf32>
    %31 = vector.broadcast %21 : vector<8x1xf32> to vector<8x128xf32>
    %32 = arith.subf %17, %31 : vector<8x128xf32>
    %cst_16 = arith.constant 9.99999974E-6 : f32
    %33 = vector.broadcast %cst_16 : f32 to vector<8x1xf32>
    %34 = arith.addf %30, %33 : vector<8x1xf32>
    %35 = math.rsqrt %34 : vector<8x1xf32>
    %36 = vector.broadcast %35 : vector<8x1xf32> to vector<8x128xf32>
    %37 = arith.mulf %32, %36 : vector<8x128xf32>
    %c0_17 = arith.constant 0 : index
    %c0_18 = arith.constant 0 : index
    %38 = vector.load %arg6[%c0_17, %c0_18] : memref<1x128xf32, #tpu.memory_space<vmem>>, vector<1x128xf32>
    %39 = vector.broadcast %38 : vector<1x128xf32> to vector<8x128xf32>
    %40 = arith.mulf %37, %39 : vector<8x128xf32>
    %c0_19 = arith.constant 0 : index
    %c0_20 = arith.constant 0 : index
    %41 = vector.load %arg7[%c0_19, %c0_20] : memref<1x128xf32, #tpu.memory_space<vmem>>, vector<1x128xf32>
    %42 = vector.broadcast %41 : vector<1x128xf32> to vector<8x128xf32>
    %43 = arith.addf %40, %42 : vector<8x128xf32>
    %c0_21 = arith.constant 0 : index
    %c0_22 = arith.constant 0 : index
    %44 = vector.load %arg8[%c0_21, %c0_22] : memref<8x128xf32, #tpu.memory_space<vmem>>, vector<8x128xf32>
    tpu.vector_store %arg8[%c0_21, %c0_22], %43 {strides = array<i32>} : memref<8x128xf32, #tpu.memory_space<vmem>>, vector<8x128xf32>,
    return
  }
  func.func @transform_0(%arg0: i32) -> (i32, i32) {
    %c0_i32 = arith.constant 0 : i32
    %c0_i32_0 = arith.constant 0 : i32
    return %arg0, %c0_i32 : i32, i32
  }
  func.func @transform_1(%arg0: i32) -> (i32, i32) {
    %c0_i32 = arith.constant 0 : i32
    %c0_i32_0 = arith.constant 0 : i32
    %c0_i32_1 = arith.constant 0 : i32
    return %c0_i32, %c0_i32_0 : i32, i32
  }
  func.func @transform_2(%arg0: i32) -> (i32, i32) {
    %c0_i32 = arith.constant 0 : i32
    %c0_i32_0 = arith.constant 0 : i32
    %c0_i32_1 = arith.constant 0 : i32
    return %c0_i32, %c0_i32_0 : i32, i32
  }
  func.func @transform_3(%arg0: i32) -> (i32, i32) {
    %c0_i32 = arith.constant 0 : i32
    %c0_i32_0 = arith.constant 0 : i32
    %c0_i32_1 = arith.constant 0 : i32
    return %c0_i32, %c0_i32_0 : i32, i32
  }
  func.func @transform_4(%arg0: i32) -> (i32, i32) {
    %c0_i32 = arith.constant 0 : i32
    %c0_i32_0 = arith.constant 0 : i32
    %c0_i32_1 = arith.constant 0 : i32
    return %c0_i32, %c0_i32_0 : i32, i32
  }
  func.func @transform_5(%arg0: i32) -> (i32, i32) {
    %c0_i32 = arith.constant 0 : i32
    %c0_i32_0 = arith.constant 0 : i32
    %c0_i32_1 = arith.constant 0 : i32
    return %c0_i32, %c0_i32_0 : i32, i32
  }
  func.func @transform_6(%arg0: i32) -> (i32, i32) {
    %c0_i32 = arith.constant 0 : i32
    %c0_i32_0 = arith.constant 0 : i32
    %c0_i32_1 = arith.constant 0 : i32
    return %c0_i32, %c0_i32_0 : i32, i32
  }
  func.func @transform_7(%arg0: i32) -> (i32, i32) {
    %c0_i32 = arith.constant 0 : i32
    %c0_i32_0 = arith.constant 0 : i32
    return %arg0, %c0_i32 : i32, i32
  }
}

module attributes {stable_mosaic.version = 11 : i64} {
  func.func @_resnet_block_kernel(%arg0: i32, %arg1: memref<8x128xf32, #tpu.memory_space<vmem>>, %arg2: memref<128x256xbf16, #tpu.memory_space<vmem>>, %arg3: memref<1x128xf32, #tpu.memory_space<vmem>>, %arg4: memref<128x128xbf16, #tpu.memory_space<vmem>>, %arg5: memref<1x128xf32, #tpu.memory_space<vmem>>, %arg6: memref<1x128xf32, #tpu.memory_space<vmem>>, %arg7: memref<1x128xf32, #tpu.memory_space<vmem>>, %arg8: memref<8x128xf32, #tpu.memory_space<vmem>>) attributes {dimension_semantics = [#tpu.dimension_semantics<parallel>], iteration_bounds = array<i64: 2>, scalar_prefetch = 0 : i64, scratch_operands = 0 : i64, tpu.core_type = #tpu.core_type<tc>, window_params = [{transform_indices = @transform_0, window_bounds = array<i64: 8, 128>}, {pipeline_mode = #tpu.pipeline_mode<synchronous>, transform_indices = @transform_1, window_bounds = array<i64: 128, 256>}, {pipeline_mode = #tpu.pipeline_mode<synchronous>, transform_indices = @transform_2, window_bounds = array<i64: 1, 128>}, {pipeline_mode = #tpu.pipeline_mode<synchronous>, transform_indices = @transform_3, window_bounds = array<i64: 128, 128>}, {pipeline_mode = #tpu.pipeline_mode<synchronous>, transform_indices = @transform_4, window_bounds = array<i64: 1, 128>}, {pipeline_mode = #tpu.pipeline_mode<synchronous>, transform_indices = @transform_5, window_bounds = array<i64: 1, 128>}, {pipeline_mode = #tpu.pipeline_mode<synchronous>, transform_indices = @transform_6, window_bounds = array<i64: 1, 128>}, {transform_indices = @transform_7, window_bounds = array<i64: 8, 128>}]} {
    %c0 = arith.constant 0 : index
    %c0_0 = arith.constant 0 : index
    %0 = vector.load %arg1[%c0, %c0_0] : memref<8x128xf32, #tpu.memory_space<vmem>>, vector<8x128xf32>
    %1 = arith.truncf %0 : vector<8x128xf32> to vector<8x128xbf16>
    %c0_1 = arith.constant 0 : index
    %c0_2 = arith.constant 0 : index
    %2 = vector.load %arg2[%c0_1, %c0_2] : memref<128x256xbf16, #tpu.memory_space<vmem>>, vector<128x256xbf16>
    %cst = arith.constant dense<0.000000e+00> : vector<8x256xf32>
    %3 = tpu.matmul %1, %2, %cst {dimension_numbers = #tpu.dot_dimension_numbers<[1], [0], [0], [1], [0, 0, 1, 1], [], []>} : vector<8x128xbf16>, vector<128x256xbf16>, vector<8x256xf32> -> vector<8x256xf32>
    %4 = vector.extract_strided_slice %3 {offsets = [0, 0], sizes = [8, 128], strides = [1, 1]} : vector<8x256xf32> to vector<8x128xf32>
    %c0_3 = arith.constant 0 : index
    %c0_4 = arith.constant 0 : index
    %5 = vector.load %arg3[%c0_3, %c0_4] : memref<1x128xf32, #tpu.memory_space<vmem>>, vector<1x128xf32>
    %6 = vector.broadcast %5 : vector<1x128xf32> to vector<8x128xf32>
    %7 = arith.addf %4, %6 : vector<8x128xf32>
    %cst_5 = arith.constant 0.000000e+00 : f32
    %8 = vector.broadcast %cst_5 : f32 to vector<8x128xf32>
    %9 = arith.maximumf %7, %8 : vector<8x128xf32>
    %10 = vector.extract_strided_slice %3 {offsets = [0, 128], sizes = [8, 128], strides = [1, 1]} : vector<8x256xf32> to vector<8x128xf32>
    %11 = arith.truncf %9 : vector<8x128xf32> to vector<8x128xbf16>
    %c0_6 = arith.constant 0 : index
    %c0_7 = arith.constant 0 : index
    %12 = vector.load %arg4[%c0_6, %c0_7] : memref<128x128xbf16, #tpu.memory_space<vmem>>, vector<128x128xbf16>
    %cst_8 = arith.constant dense<0.000000e+00> : vector<8x128xf32>
    %13 = tpu.matmul %11, %12, %cst_8 {dimension_numbers = #tpu.dot_dimension_numbers<[1], [0], [0], [1], [0, 0, 1, 1], [], []>} : vector<8x128xbf16>, vector<128x128xbf16>, vector<8x128xf32> -> vector<8x128xf32>
    %14 = arith.addf %10, %13 : vector<8x128xf32>
    %c0_9 = arith.constant 0 : index
    %c0_10 = arith.constant 0 : index
    %15 = vector.load %arg5[%c0_9, %c0_10] : memref<1x128xf32, #tpu.memory_space<vmem>>, vector<1x128xf32>
    %16 = vector.broadcast %15 : vector<1x128xf32> to vector<8x128xf32>
    %17 = arith.addf %14, %16 : vector<8x128xf32>
    %cst_11 = arith.constant dense<0.000000e+00> : vector<8xf32>
    %18 = vector.multi_reduction <add>, %17, %cst_11 [1] : vector<8x128xf32> to vector<8xf32>
    %19 = vector.shape_cast %18 : vector<8xf32> to vector<8x1xf32>
    %cst_12 = arith.constant 3.125000e-02 : f32
    %20 = vector.broadcast %cst_12 : f32 to vector<8x1xf32>
    %21 = arith.mulf %19, %20 : vector<8x1xf32>
    %22 = arith.mulf %17, %17 : vector<8x128xf32>
    %cst_13 = arith.constant dense<0.000000e+00> : vector<8xf32>
    %23 = vector.multi_reduction <add>, %22, %cst_13 [1] : vector<8x128xf32> to vector<8xf32>
    %24 = vector.shape_cast %23 : vector<8xf32> to vector<8x1xf32>
    %cst_14 = arith.constant 3.125000e-02 : f32
    %25 = vector.broadcast %cst_14 : f32 to vector<8x1xf32>
    %26 = arith.mulf %24, %25 : vector<8x1xf32>
    %27 = arith.mulf %21, %21 : vector<8x1xf32>
    %28 = arith.subf %26, %27 : vector<8x1xf32>
    %cst_15 = arith.constant 0.000000e+00 : f32
    %29 = vector.broadcast %cst_15 : f32 to vector<8x1xf32>
    %30 = arith.maximumf %28, %29 : vector<8x1xf32>
    %31 = vector.broadcast %21 : vector<8x1xf32> to vector<8x128xf32>
    %32 = arith.subf %17, %31 : vector<8x128xf32>
    %cst_16 = arith.constant 9.99999974E-6 : f32
    %33 = vector.broadcast %cst_16 : f32 to vector<8x1xf32>
    %34 = arith.addf %30, %33 : vector<8x1xf32>
    %35 = math.rsqrt %34 : vector<8x1xf32>
    %36 = vector.broadcast %35 : vector<8x1xf32> to vector<8x128xf32>
    %37 = arith.mulf %32, %36 : vector<8x128xf32>
    %c0_17 = arith.constant 0 : index
    %c0_18 = arith.constant 0 : index
    %38 = vector.load %arg6[%c0_17, %c0_18] : memref<1x128xf32, #tpu.memory_space<vmem>>, vector<1x128xf32>
    %39 = vector.broadcast %38 : vector<1x128xf32> to vector<8x128xf32>
    %40 = arith.mulf %37, %39 : vector<8x128xf32>
    %c0_19 = arith.constant 0 : index
    %c0_20 = arith.constant 0 : index
    %41 = vector.load %arg7[%c0_19, %c0_20] : memref<1x128xf32, #tpu.memory_space<vmem>>, vector<1x128xf32>
    %42 = vector.broadcast %41 : vector<1x128xf32> to vector<8x128xf32>
    %43 = arith.addf %40, %42 : vector<8x128xf32>
    %c0_21 = arith.constant 0 : index
    %c0_22 = arith.constant 0 : index
    %44 = vector.load %arg8[%c0_21, %c0_22] : memref<8x128xf32, #tpu.memory_space<vmem>>, vector<8x128xf32>
    tpu.vector_store %arg8[%c0_21, %c0_22], %43 {strides = array<i32>} : memref<8x128xf32, #tpu.memory_space<vmem>>, vector<8x128xf32>,
    return
  }
  func.func @transform_0(%arg0: i32) -> (i32, i32) {
    %c0_i32 = arith.constant 0 : i32
    %c0_i32_0 = arith.constant 0 : i32
    return %arg0, %c0_i32 : i32, i32
  }
  func.func @transform_1(%arg0: i32) -> (i32, i32) {
    %c0_i32 = arith.constant 0 : i32
    %c0_i32_0 = arith.constant 0 : i32
    %c0_i32_1 = arith.constant 0 : i32
    return %c0_i32, %c0_i32_0 : i32, i32
  }
  func.func @transform_2(%arg0: i32) -> (i32, i32) {
    %c0_i32 = arith.constant 0 : i32
    %c0_i32_0 = arith.constant 0 : i32
    %c0_i32_1 = arith.constant 0 : i32
    return %c0_i32, %c0_i32_0 : i32, i32
  }
  func.func @transform_3(%arg0: i32) -> (i32, i32) {
    %c0_i32 = arith.constant 0 : i32
    %c0_i32_0 = arith.constant 0 : i32
    %c0_i32_1 = arith.constant 0 : i32
    return %c0_i32, %c0_i32_0 : i32, i32
  }
  func.func @transform_4(%arg0: i32) -> (i32, i32) {
    %c0_i32 = arith.constant 0 : i32
    %c0_i32_0 = arith.constant 0 : i32
    %c0_i32_1 = arith.constant 0 : i32
    return %c0_i32, %c0_i32_0 : i32, i32
  }
  func.func @transform_5(%arg0: i32) -> (i32, i32) {
    %c0_i32 = arith.constant 0 : i32
    %c0_i32_0 = arith.constant 0 : i32
    %c0_i32_1 = arith.constant 0 : i32
    return %c0_i32, %c0_i32_0 : i32, i32
  }
  func.func @transform_6(%arg0: i32) -> (i32, i32) {
    %c0_i32 = arith.constant 0 : i32
    %c0_i32_0 = arith.constant 0 : i32
    %c0_i32_1 = arith.constant 0 : i32
    return %c0_i32, %c0_i32_0 : i32, i32
  }
  func.func @transform_7(%arg0: i32) -> (i32, i32) {
    %c0_i32 = arith.constant 0 : i32
    %c0_i32_0 = arith.constant 0 : i32
    return %arg0, %c0_i32 : i32, i32
  }
}

</mosaic_0001>

<llo_original>
// kernel: tpu_custom_call.1
$region0: #{tpu_custom_call.1}
  #allocation0 [shape = 'u32[]', space=smem, size = 0x4, offset = 0x4, fixed_abs, tag = 'smem constant byte address 0x4 - core index']
  #allocation1 [shape = 'u32[144,128]{1,0:T(1,128)}', space=vmem, size = 0x12000, scoped, tag = 'internal scratch']
  %s0 = inlined_call_operand.hbm [shape: f32[16,128], index: 0, kind: input, shape index: {}]
  %s1 = inlined_call_operand.hbm [shape: bf16[128,256], index: 1, kind: input, shape index: {}]
  %s2 = inlined_call_operand.vmem [shape: f32[1,128], index: 2, kind: input, shape index: {}]
  %s3 = inlined_call_operand.hbm [shape: bf16[128,128], index: 3, kind: input, shape index: {}]
  %s4 = inlined_call_operand.vmem [shape: f32[1,128], index: 4, kind: input, shape index: {}]
  %s5 = inlined_call_operand.vmem [shape: f32[1,128], index: 5, kind: input, shape index: {}]
  %s6 = inlined_call_operand.vmem [shape: f32[1,128], index: 6, kind: input, shape index: {}]
  %s7 = inlined_call_operand.hbm [shape: f32[16,128], index: 7, kind: output, shape index: {}]
  %s8 = sld [smem:[#allocation0]]
  $region73: #{tpu_custom_call.1} parent=0
    _
  %s10 = ssub.s32 1, %s8
  %s11 = scalar_select 0, %s10, %s8
  $region1: #{tpu_custom_call.1} parent=0
    #allocation2 [shape = 'u8[8192]{0}', space=vmem, size = 0x2000, scoped, tag = 'input window, operand 0']
    #allocation3 [shape = 's32[2]{0}', space=sflag, size = 0x8, scoped, tag = 'scoped memory for tpu_custom_call.1']
    #allocation4 [shape = 's32[2]{0}', space=sflag, size = 0x8, scoped, tag = 'scoped memory for tpu_custom_call.1']
    #allocation5 [shape = 'u8[65536]{0}', space=vmem, size = 0x10000, scoped, tag = 'input window, operand 1, single buffered']
    #allocation6 [shape = 's32[1]{0}', space=sflag, size = 0x4, scoped, tag = 'scoped memory for tpu_custom_call.1']
    #allocation7 [shape = 'u8[32768]{0}', space=vmem, size = 0x8000, scoped, tag = 'input window, operand 3, single buffered']
    #allocation8 [shape = 'u8[8192]{0}', space=vmem, size = 0x2000, scoped, tag = 'output window, operand 0']
    %12 = vsyncpa [#allocation3], 0
    %s13 = scalar_lea.sflag [#allocation3], 1
    %14 = vsyncpa %s13, 0
    %15 = vsyncpa [#allocation6], 0
    %16 = vsyncpa [#allocation4], 0
    %s17 = scalar_lea.sflag [#allocation4], 1
    %18 = vsyncpa %s17, 0
    loop: start=0, step=1, limit=4
    $region2: #{tpu_custom_call.1} parent=1 // loop_pre_header
      _
    $region3: #{tpu_custom_call.1} parent=1 // loop_header
      %s20 = sphi 0, %s24
      %p21 = scmp.ge.s32.totalorder %s20, 4
      %s30 = sphi 0, %s32
      %s33 = sphi 0, %s30
      %s34 = sphi 0, %s33
      %s50 = sphi 0, %s34
      %s54 = sphi 0, %s54
      %s56 = sphi 0, %s54
      %s57 = sphi 0, %s56
      %s71 = sphi 0, %s57
      %s75 = sphi 0, %s75
      %s77 = sphi 0, %s75
      %s78 = sphi 0, %s77
      %s92 = sphi 0, %s78
      %s96 = sphi 0, %s96
      %s98 = sphi 0, %s96
      %s99 = sphi 0, %s98
      %s113 = sphi 0, %s99
      %s117 = sphi 0, %s117
      %s119 = sphi 0, %s117
      %s120 = sphi 0, %s119
      %s134 = sphi 0, %s120
      %s138 = sphi 0, %s138
      %s140 = sphi 0, %s138
      %s141 = sphi 0, %s140
      %s155 = sphi 0, %s141
      %s159 = sphi 0, %s159
      %s161 = sphi 0, %s159
      %s162 = sphi 0, %s161
      %s176 = sphi 0, %s162
      %s182 = sphi 0, %s184
      %s185 = sphi 0, %s182
      %s186 = sphi 0, %s185
      %s202 = sphi 0, %s186
    $region4: #{tpu_custom_call.1} parent=1 // loop_header_branch
      %23 = sbr.rel (%p21) target = $region8
    $region5: #{tpu_custom_call.1} parent=1 // loop_body
      %s25 = ssub.s32 %s20, 1
      %s26 = ssub.s32 %s20, 2
      %s27 = sadd.s32 %s20, 1
      %s28 = ssub.s32 %s20, %s27
      %p29 = scmp.eq.s32.totalorder %s28, 0
      %s31 = sadd.s32 %s30, 1
      %s32 = scalar_select %p29, %s30, %s31
      %p35 = pneg %p29
      %p36 = scmp.eq.s32.totalorder %s20, 1
      %p37 = por %p35, %p36
      %p38 = scmp.ne.s32.totalorder %s30, %s33
      %p39 = scmp.eq.s32.totalorder %s20, 0
      %p40 = por %p38, %p39
      %p41 = scmp.ne.s32.totalorder %s30, %s33
      %p42 = scmp.eq.s32.totalorder %s25, 1
      %p43 = por %p41, %p42
      %p44 = scmp.ne.s32.totalorder %s33, %s34
      %p45 = scmp.eq.s32.totalorder %s25, 0
      %p46 = por %p44, %p45
      %p47 = scmp.ne.s32.totalorder %s33, %s34
      %p48 = scmp.eq.s32.totalorder %s26, 1
      %p49 = por %p47, %p48
      %p51 = scmp.ne.s32.totalorder %s34, %s50
      %p52 = scmp.eq.s32.totalorder %s26, 0
      %p53 = por %p51, %p52
      %s55 = sadd.s32 %s54, 1
      %p58 = scmp.eq.s32.totalorder %s20, 1
      %p59 = scmp.ne.s32.totalorder %s54, %s56
      %p60 = scmp.eq.s32.totalorder %s20, 0
      %p61 = por %p59, %p60
      %p62 = scmp.ne.s32.totalorder %s54, %s56
      %p63 = scmp.eq.s32.totalorder %s25, 1
      %p64 = por %p62, %p63
      %p65 = scmp.ne.s32.totalorder %s56, %s57
      %p66 = scmp.eq.s32.totalorder %s25, 0
      %p67 = por %p65, %p66
      %p68 = scmp.ne.s32.totalorder %s56, %s57
      %p69 = scmp.eq.s32.totalorder %s26, 1
      %p70 = por %p68, %p69
      %p72 = scmp.ne.s32.totalorder %s57, %s71
      %p73 = scmp.eq.s32.totalorder %s26, 0
      %p74 = por %p72, %p73
      %s76 = sadd.s32 %s75, 1
      %p79 = scmp.eq.s32.totalorder %s20, 1
      %p80 = scmp.ne.s32.totalorder %s75, %s77
      %p81 = scmp.eq.s32.totalorder %s20, 0
      %p82 = por %p80, %p81
      %p83 = scmp.ne.s32.totalorder %s75, %s77
      %p84 = scmp.eq.s32.totalorder %s25, 1
      %p85 = por %p83, %p84
      %p86 = scmp.ne.s32.totalorder %s77, %s78
      %p87 = scmp.eq.s32.totalorder %s25, 0
      %p88 = por %p86, %p87
      %p89 = scmp.ne.s32.totalorder %s77, %s78
      %p90 = scmp.eq.s32.totalorder %s26, 1
      %p91 = por %p89, %p90
      %p93 = scmp.ne.s32.totalorder %s78, %s92
      %p94 = scmp.eq.s32.totalorder %s26, 0
      %p95 = por %p93, %p94
      %s97 = sadd.s32 %s96, 1
      %p100 = scmp.eq.s32.totalorder %s20, 1
      %p101 = scmp.ne.s32.totalorder %s96, %s98
      %p102 = scmp.eq.s32.totalorder %s20, 0
      %p103 = por %p101, %p102
      %p104 = scmp.ne.s32.totalorder %s96, %s98
      %p105 = scmp.eq.s32.totalorder %s25, 1
      %p106 = por %p104, %p105
      %p107 = scmp.ne.s32.totalorder %s98, %s99
      %p108 = scmp.eq.s32.totalorder %s25, 0
      %p109 = por %p107, %p108
      %p110 = scmp.ne.s32.totalorder %s98, %s99
      %p111 = scmp.eq.s32.totalorder %s26, 1
      %p112 = por %p110, %p111
      %p114 = scmp.ne.s32.totalorder %s99, %s113
      %p115 = scmp.eq.s32.totalorder %s26, 0
      %p116 = por %p114, %p115
      %s118 = sadd.s32 %s117, 1
      %p121 = scmp.eq.s32.totalorder %s20, 1
      %p122 = scmp.ne.s32.totalorder %s117, %s119
      %p123 = scmp.eq.s32.totalorder %s20, 0
      %p124 = por %p122, %p123
      %p125 = scmp.ne.s32.totalorder %s117, %s119
      %p126 = scmp.eq.s32.totalorder %s25, 1
      %p127 = por %p125, %p126
      %p128 = scmp.ne.s32.totalorder %s119, %s120
      %p129 = scmp.eq.s32.totalorder %s25, 0
      %p130 = por %p128, %p129
      %p131 = scmp.ne.s32.totalorder %s119, %s120
      %p132 = scmp.eq.s32.totalorder %s26, 1
      %p133 = por %p131, %p132
      %p135 = scmp.ne.s32.totalorder %s120, %s134
      %p136 = scmp.eq.s32.totalorder %s26, 0
      %p137 = por %p135, %p136
      %s139 = sadd.s32 %s138, 1
      %p142 = scmp.eq.s32.totalorder %s20, 1
      %p143 = scmp.ne.s32.totalorder %s138, %s140
      %p144 = scmp.eq.s32.totalorder %s20, 0
      %p145 = por %p143, %p144
      %p146 = scmp.ne.s32.totalorder %s138, %s140
      %p147 = scmp.eq.s32.totalorder %s25, 1
      %p148 = por %p146, %p147
      %p149 = scmp.ne.s32.totalorder %s140, %s141
      %p150 = scmp.eq.s32.totalorder %s25, 0
      %p151 = por %p149, %p150
      %p152 = scmp.ne.s32.totalorder %s140, %s141
      %p153 = scmp.eq.s32.totalorder %s26, 1
      %p154 = por %p152, %p153
      %p156 = scmp.ne.s32.totalorder %s141, %s155
      %p157 = scmp.eq.s32.totalorder %s26, 0
      %p158 = por %p156, %p157
      %s160 = sadd.s32 %s159, 1
      %p163 = scmp.eq.s32.totalorder %s20, 1
      %p164 = scmp.ne.s32.totalorder %s159, %s161
      %p165 = scmp.eq.s32.totalorder %s20, 0
      %p166 = por %p164, %p165
      %p167 = scmp.ne.s32.totalorder %s159, %s161
      %p168 = scmp.eq.s32.totalorder %s25, 1
      %p169 = por %p167, %p168
      %p170 = scmp.ne.s32.totalorder %s161, %s162
      %p171 = scmp.eq.s32.totalorder %s25, 0
      %p172 = por %p170, %p171
      %p173 = scmp.ne.s32.totalorder %s161, %s162
      %p174 = scmp.eq.s32.totalorder %s26, 1
      %p175 = por %p173, %p174
      %p177 = scmp.ne.s32.totalorder %s162, %s176
      %p178 = scmp.eq.s32.totalorder %s26, 0
      %p179 = por %p177, %p178
      %s180 = ssub.s32 %s20, %s27
      %p181 = scmp.eq.s32.totalorder %s180, 0
      %s183 = sadd.s32 %s182, 1
      %s184 = scalar_select %p181, %s182, %s183
      %p187 = pneg %p181
      %p188 = scmp.eq.s32.totalorder %s20, 1
      %p189 = por %p187, %p188
      %p190 = scmp.ne.s32.totalorder %s182, %s185
      %p191 = scmp.eq.s32.totalorder %s20, 0
      %p192 = por %p190, %p191
      %p193 = scmp.ne.s32.totalorder %s182, %s185
      %p194 = scmp.eq.s32.totalorder %s25, 1
      %p195 = por %p193, %p194
      %p196 = scmp.ne.s32.totalorder %s185, %s186
      %p197 = scmp.eq.s32.totalorder %s25, 0
      %p198 = por %p196, %p197
      %p199 = scmp.ne.s32.totalorder %s185, %s186
      %p200 = scmp.eq.s32.totalorder %s26, 1
      %p201 = por %p199, %p200
      %p203 = scmp.ne.s32.totalorder %s186, %s202
      %p204 = scmp.eq.s32.totalorder %s26, 0
      %p205 = por %p203, %p204
      %p206 = scmp.le.s32.totalorder 1, %s20
      %p207 = scmp.lt.s32.totalorder %s20, 3
      %p208 = pnand %p206, %p207
      %p209 = pneg %p208
      // Predicated region
      $region9: #{tpu_custom_call.1} parent=5 // pred_check
        _
      $region10: #{tpu_custom_call.1} parent=5 // pred_check_branch
        %211 = sbr.rel (%p208) target = $region12
      $region11: #{tpu_custom_call.1} parent=5 // pred_region
        %s212 = ssub.s32 %s20, 1
        // Predicated region
        $region13: #{tpu_custom_call.1} parent=11 // pred_check
          %p213 = pneg %p67
        $region14: #{tpu_custom_call.1} parent=11 // pred_check_branch
          %215 = sbr.rel (%p213) target = $region16
        $region15: #{tpu_custom_call.1} parent=11 // pred_region
          %s217 = ssub.s32 2048, 2048
          %218 = vsyncadd [#allocation6], %s217
          %s219 = sshll.u32 [#allocation5], 4
          %s220 = int_to_ptr.vmem [resolvable:$true] %s219
          %225 = dma.hbm_to_vmem [thread:$0]  %s1, 2048, %s220, [#allocation6], 128, 128, 8
        $region16: #{tpu_custom_call.1} parent=11 // pred_fallthru
          _
        // Predicated region
        $region17: #{tpu_custom_call.1} parent=11 // pred_check
          %p226 = pneg %p88
        $region18: #{tpu_custom_call.1} parent=11 // pred_check_branch
          %228 = sbr.rel (%p226) target = $region20
        $region19: #{tpu_custom_call.1} parent=11 // pred_region
          _
        $region20: #{tpu_custom_call.1} parent=11 // pred_fallthru
          _
        // Predicated region
        $region21: #{tpu_custom_call.1} parent=11 // pred_check
          %p229 = pneg %p109
        $region22: #{tpu_custom_call.1} parent=11 // pred_check_branch
          %231 = sbr.rel (%p229) target = $region24
        $region23: #{tpu_custom_call.1} parent=11 // pred_region
          %s233 = ssub.s32 1024, 1024
          %234 = vsyncadd [#allocation6], %s233
          %s235 = sshll.u32 [#allocation7], 4
          %s236 = int_to_ptr.vmem [resolvable:$true] %s235
          %241 = dma.hbm_to_vmem [thread:$0]  %s3, 1024, %s236, [#allocation6], 64, 64, 4
        $region24: #{tpu_custom_call.1} parent=11 // pred_fallthru
          _
        // Predicated region
        $region25: #{tpu_custom_call.1} parent=11 // pred_check
          %p242 = pneg %p130
        $region26: #{tpu_custom_call.1} parent=11 // pred_check_branch
          %244 = sbr.rel (%p242) target = $region28
        $region27: #{tpu_custom_call.1} parent=11 // pred_region
          _
        $region28: #{tpu_custom_call.1} parent=11 // pred_fallthru
          _
        // Predicated region
        $region29: #{tpu_custom_call.1} parent=11 // pred_check
          %p245 = pneg %p151
        $region30: #{tpu_custom_call.1} parent=11 // pred_check_branch
          %247 = sbr.rel (%p245) target = $region32
        $region31: #{tpu_custom_call.1} parent=11 // pred_region
          _
        $region32: #{tpu_custom_call.1} parent=11 // pred_fallthru
          _
        // Predicated region
        $region33: #{tpu_custom_call.1} parent=11 // pred_check
          %p248 = pneg %p172
        $region34: #{tpu_custom_call.1} parent=11 // pred_check_branch
          %250 = sbr.rel (%p248) target = $region36
        $region35: #{tpu_custom_call.1} parent=11 // pred_region
          _
        $region36: #{tpu_custom_call.1} parent=11 // pred_fallthru
          _
      $region12: #{tpu_custom_call.1} parent=5 // pred_fallthru
        _
      %p251 = scmp.lt.s32.totalorder %s20, 2
      // Predicated region
      $region37: #{tpu_custom_call.1} parent=5 // pred_check
        %p252 = pneg %p251
      $region38: #{tpu_custom_call.1} parent=5 // pred_check_branch
        %254 = sbr.rel (%p252) target = $region40
      $region39: #{tpu_custom_call.1} parent=5 // pred_region
        // Predicated region
        $region41: #{tpu_custom_call.1} parent=39 // pred_check
          %p255 = pneg %p40
        $region42: #{tpu_custom_call.1} parent=39 // pred_check_branch
          %257 = sbr.rel (%p255) target = $region44
        $region43: #{tpu_custom_call.1} parent=39 // pred_region
          %s258 = sand.u32 %s30, 1
          %s259 = scalar_lea.sflag [#allocation3], %s258
          %s260 = sand.u32 %s30, 1
          %s261 = smul.addr %s260, 8
          %s262 = scalar_lea.vmem [#allocation2], %s261
          %s264 = ssub.s32 128, 128
          %265 = vsyncadd %s259, %s264
          %s266 = smul.addr %s20, 128
          %s267 = scalar_lea.hbm %s0, %s266
          %s269 = sshll.u32 %s262, 4
          %s270 = int_to_ptr.vmem [resolvable:$true] %s269
          %272 = dma.hbm_to_vmem [thread:$0]  %s267, 128, %s270, %s259
        $region44: #{tpu_custom_call.1} parent=39 // pred_fallthru
          _
      $region40: #{tpu_custom_call.1} parent=5 // pred_fallthru
        _
      %p273 = scmp.le.s32.totalorder 1, %s20
      %p274 = scmp.lt.s32.totalorder %s20, 3
      %p275 = pnand %p273, %p274
      %p276 = pneg %p275
      // Predicated region
      $region45: #{tpu_custom_call.1} parent=5 // pred_check
        _
      $region46: #{tpu_custom_call.1} parent=5 // pred_check_branch
        %278 = sbr.rel (%p275) target = $region48
      $region47: #{tpu_custom_call.1} parent=5 // pred_region
        %s279 = ssub.s32 %s20, 1
        %s280 = sand.u32 %s33, 1
        %s281 = scalar_lea.sflag [#allocation3], %s280
        %s282 = sand.u32 %s33, 1
        %s283 = smul.addr %s282, 8
        %s284 = scalar_lea.vmem [#allocation2], %s283
        // Predicated region
        $region49: #{tpu_custom_call.1} parent=47 // pred_check
          %p285 = pneg %p46
        $region50: #{tpu_custom_call.1} parent=47 // pred_check_branch
          %287 = sbr.rel (%p285) target = $region52
        $region51: #{tpu_custom_call.1} parent=47 // pred_region
          %288 = dma.done %s281, 128
        $region52: #{tpu_custom_call.1} parent=47 // pred_fallthru
          _
        // Predicated region
        $region53: #{tpu_custom_call.1} parent=47 // pred_check
          %p289 = pneg %p67
        $region54: #{tpu_custom_call.1} parent=47 // pred_check_branch
          %291 = sbr.rel (%p289) target = $region56
        $region55: #{tpu_custom_call.1} parent=47 // pred_region
          %292 = dma.done [#allocation6], 2048
        $region56: #{tpu_custom_call.1} parent=47 // pred_fallthru
          _
        // Predicated region
        $region57: #{tpu_custom_call.1} parent=47 // pred_check
          %p293 = pneg %p109
        $region58: #{tpu_custom_call.1} parent=47 // pred_check_branch
          %295 = sbr.rel (%p293) target = $region60
        $region59: #{tpu_custom_call.1} parent=47 // pred_region
          %296 = dma.done [#allocation6], 1024
        $region60: #{tpu_custom_call.1} parent=47 // pred_fallthru
          _
        %s297 = sand.u32 %s33, 1
        %s298 = scalar_lea.sflag [#allocation3], %s297
        %s299 = sand.u32 %s33, 1
        %s300 = smul.addr %s299, 8
        %s301 = scalar_lea.vmem [#allocation2], %s300
        %p302 = pneg %p46
        %p303 = pneg %p43
        %p304 = pneg %p67
        %p305 = pneg %p64
        %p306 = pneg %p88
        %p307 = pneg %p85
        %p308 = pneg %p109
        %p309 = pneg %p106
        %p310 = pneg %p130
        %p311 = pneg %p127
        %p312 = pneg %p151
        %p313 = pneg %p148
        %p314 = pneg %p172
        %p315 = pneg %p169
        %p316 = pneg %p198
        %p317 = pneg %p195
        %s318 = sand.u32 %s185, 1
        %s319 = scalar_lea.sflag [#allocation4], %s318
        %s320 = sand.u32 %s185, 1
        %s321 = smul.addr %s320, 8
        %s322 = scalar_lea.vmem [#allocation8], %s321
        %v324 = vld [vmem:[%s284] sm:$0xff]
        %v325 = vpack.c.bf16 %v324, %v324
        %v326 = vld [vmem:[#allocation5] sm:$0xff]
        %v327 = vld [vmem:[#allocation5 + $0x8] sm:$0xff]
        %v328 = vld [vmem:[#allocation5 + $0x10] sm:$0xff]
        %v329 = vld [vmem:[#allocation5 + $0x18] sm:$0xff]
        %v330 = vld [vmem:[#allocation5 + $0x20] sm:$0xff]
        %v331 = vld [vmem:[#allocation5 + $0x28] sm:$0xff]
        %v332 = vld [vmem:[#allocation5 + $0x30] sm:$0xff]
        %v333 = vld [vmem:[#allocation5 + $0x38] sm:$0xff]
        %v334 = vld [vmem:[#allocation5 + $0x40] sm:$0xff]
        %v335 = vld [vmem:[#allocation5 + $0x48] sm:$0xff]
        %v336 = vld [vmem:[#allocation5 + $0x50] sm:$0xff]
        %v337 = vld [vmem:[#allocation5 + $0x58] sm:$0xff]
        %v338 = vld [vmem:[#allocation5 + $0x60] sm:$0xff]
        %v339 = vld [vmem:[#allocation5 + $0x68] sm:$0xff]
        %v340 = vld [vmem:[#allocation5 + $0x70] sm:$0xff]
        %v341 = vld [vmem:[#allocation5 + $0x78] sm:$0xff]
        %v358 = vunpack.c.l.b16 %v326
        %v359 = vunpack.c.h.b16 %v326
        %v360 = vunpack.c.l.b16 %v327
        %v361 = vunpack.c.h.b16 %v327
        %v362 = vunpack.c.l.b16 %v328
        %v363 = vunpack.c.h.b16 %v328
        %v364 = vunpack.c.l.b16 %v329
        %v365 = vunpack.c.h.b16 %v329
        %v366 = vunpack.c.l.b16 %v330
        %v367 = vunpack.c.h.b16 %v330
        %v368 = vunpack.c.l.b16 %v331
        %v369 = vunpack.c.h.b16 %v331
        %v370 = vunpack.c.l.b16 %v332
        %v371 = vunpack.c.h.b16 %v332
        %v372 = vunpack.c.l.b16 %v333
        %v373 = vunpack.c.h.b16 %v333
        %v374 = vunpack.c.l.b16 %v334
        %v375 = vunpack.c.h.b16 %v334
        %v376 = vunpack.c.l.b16 %v335
        %v377 = vunpack.c.h.b16 %v335
        %v378 = vunpack.c.l.b16 %v336
        %v379 = vunpack.c.h.b16 %v336
        %v380 = vunpack.c.l.b16 %v337
        %v381 = vunpack.c.h.b16 %v337
        %v382 = vunpack.c.l.b16 %v338
        %v383 = vunpack.c.h.b16 %v338
        %v384 = vunpack.c.l.b16 %v339
        %v385 = vunpack.c.h.b16 %v339
        %v386 = vunpack.c.l.b16 %v340
        %v387 = vunpack.c.h.b16 %v340
        %v388 = vunpack.c.l.b16 %v341
        %v389 = vunpack.c.h.b16 %v341
        %v390 = vpack.c.b16 %v360, %v358
        %v391 = vpack.c.b16 %v361, %v359
        %v392 = vpack.c.b16 %v364, %v362
        %v393 = vpack.c.b16 %v365, %v363
        %v394 = vpack.c.b16 %v368, %v366
        %v395 = vpack.c.b16 %v369, %v367
        %v396 = vpack.c.b16 %v372, %v370
        %v397 = vpack.c.b16 %v373, %v371
        %v398 = vpack.c.b16 %v376, %v374
        %v399 = vpack.c.b16 %v377, %v375
        %v400 = vpack.c.b16 %v380, %v378
        %v401 = vpack.c.b16 %v381, %v379
        %v402 = vpack.c.b16 %v384, %v382
        %v403 = vpack.c.b16 %v385, %v383
        %v404 = vpack.c.b16 %v388, %v386
        %v405 = vpack.c.b16 %v389, %v387
        %422 = vmatprep.subr.bf16.mxu0 %v405
        %423 = vmatpush1.bf16.msra.mxu0 %v404
        %424 = vmatprep.subr.bf16.mxu0 %v403
        %425 = vmatpush1.bf16.msra.mxu0 %v402
        %426 = vmatprep.subr.bf16.mxu0 %v401
        %427 = vmatpush1.bf16.msra.mxu0 %v400
        %428 = vmatprep.subr.bf16.mxu0 %v399
        %429 = vmatpush1.bf16.msra.mxu0 %v398
        %430 = vmatprep.subr.bf16.mxu0 %v397
        %431 = vmatpush1.bf16.msra.mxu0 %v396
        %432 = vmatprep.subr.bf16.mxu0 %v395
        %433 = vmatpush1.bf16.msra.mxu0 %v394
        %434 = vmatprep.subr.bf16.mxu0 %v393
        %435 = vmatpush1.bf16.msra.mxu0 %v392
        %436 = vmatprep.subr.bf16.mxu0 %v391
        %437 = vmatpush1.bf16.msra.mxu0 %v390
        %438 = vmatprep.subr.bf16.mxu0 0
        %439 = vmatpush2.bf16.msra.mxu0 0
        %440 = vmatprep.subr.bf16.mxu0 0
        %441 = vmatpush2.bf16.msra.mxu0 0
        %442 = vmatprep.subr.bf16.mxu0 0
        %443 = vmatpush2.bf16.msra.mxu0 0
        %444 = vmatprep.subr.bf16.mxu0 0
        %445 = vmatpush2.bf16.msra.mxu0 0
        %446 = vmatprep.subr.bf16.mxu0 0
        %447 = vmatpush2.bf16.msra.mxu0 0
        %448 = vmatprep.subr.bf16.mxu0 0
        %449 = vmatpush2.bf16.msra.mxu0 0
        %450 = vmatprep.subr.bf16.mxu0 0
        %451 = vmatpush2.bf16.msra.mxu0 0
        %452 = vmatprep.subr.bf16.mxu0 0
        %453 = vmatpush2.bf16.msra.mxu0 0
        %454 = vmatprep.mubr.bf16.mxu0 0
        %455 = vmatmul.mubr.bf16.gmra.mxu0 %v325
        %v456 = vpop.f32.mrf.mxu0
        %v457 = vadd.f32 0.0, %v456
        %v458 = vpop.f32.mrf.mxu0
        %v459 = vadd.f32 0.0, %v458
        %v460 = vpop.f32.mrf.mxu0
        %v461 = vpop.f32.mrf.mxu0
        %462 = vdwg.mxu0
        %v463 = vld [vmem:[%s2] sm:$0x1]
        %v465 = vlaneseq
        %v466 = vshrl.u32 %v465, 7
        %v467 = vsub.s32 0, %v466
        %v468 = vrot.slane %v463, %v467
        %v470 = vadd.f32 %v457, %v468
        %v471 = vmax.f32 %v470, 0.0
        %v472 = vpack.c.bf16 %v471, %v471
        %v473 = vld [vmem:[#allocation7] sm:$0xf]
        %v474 = vld [vmem:[#allocation7 + $0x4] sm:$0xf]
        %v475 = vld [vmem:[#allocation7 + $0x8] sm:$0xf]
        %v476 = vld [vmem:[#allocation7 + $0xc] sm:$0xf]
        %v477 = vld [vmem:[#allocation7 + $0x10] sm:$0xf]
        %v478 = vld [vmem:[#allocation7 + $0x14] sm:$0xf]
        %v479 = vld [vmem:[#allocation7 + $0x18] sm:$0xf]
        %v480 = vld [vmem:[#allocation7 + $0x1c] sm:$0xf]
        %v481 = vld [vmem:[#allocation7 + $0x20] sm:$0xf]
        %v482 = vld [vmem:[#allocation7 + $0x24] sm:$0xf]
        %v483 = vld [vmem:[#allocation7 + $0x28] sm:$0xf]
        %v484 = vld [vmem:[#allocation7 + $0x2c] sm:$0xf]
        %v485 = vld [vmem:[#allocation7 + $0x30] sm:$0xf]
        %v486 = vld [vmem:[#allocation7 + $0x34] sm:$0xf]
        %v487 = vld [vmem:[#allocation7 + $0x38] sm:$0xf]
        %v488 = vld [vmem:[#allocation7 + $0x3c] sm:$0xf]
        %v505 = vunpack.c.l.b16 %v473
        %v506 = vunpack.c.l.b16 %v474
        %v507 = vunpack.c.l.b16 %v475
        %v508 = vunpack.c.l.b16 %v476
        %v509 = vunpack.c.l.b16 %v477
        %v510 = vunpack.c.l.b16 %v478
        %v511 = vunpack.c.l.b16 %v479
        %v512 = vunpack.c.l.b16 %v480
        %v513 = vunpack.c.l.b16 %v481
        %v514 = vunpack.c.l.b16 %v482
        %v515 = vunpack.c.l.b16 %v483
        %v516 = vunpack.c.l.b16 %v484
        %v517 = vunpack.c.l.b16 %v485
        %v518 = vunpack.c.l.b16 %v486
        %v519 = vunpack.c.l.b16 %v487
        %v520 = vunpack.c.l.b16 %v488
        %v521 = vpack.c.b16 %v506, %v505
        %v522 = vpack.c.b16 %v508, %v507
        %v523 = vpack.c.b16 %v510, %v509
        %v524 = vpack.c.b16 %v512, %v511
        %v525 = vpack.c.b16 %v514, %v513
        %v526 = vpack.c.b16 %v516, %v515
        %v527 = vpack.c.b16 %v518, %v517
        %v528 = vpack.c.b16 %v520, %v519
        %537 = vmatprep.subr.bf16.mxu0 0
        %538 = vmatpush1.bf16.msra.mxu0 %v528
        %539 = vmatprep.subr.bf16.mxu0 0
        %540 = vmatpush1.bf16.msra.mxu0 %v527
        %541 = vmatprep.subr.bf16.mxu0 0
        %542 = vmatpush1.bf16.msra.mxu0 %v526
        %543 = vmatprep.subr.bf16.mxu0 0
        %544 = vmatpush1.bf16.msra.mxu0 %v525
        %545 = vmatprep.subr.bf16.mxu0 0
        %546 = vmatpush1.bf16.msra.mxu0 %v524
        %547 = vmatprep.subr.bf16.mxu0 0
        %548 = vmatpush1.bf16.msra.mxu0 %v523
        %549 = vmatprep.subr.bf16.mxu0 0
        %550 = vmatpush1.bf16.msra.mxu0 %v522
        %551 = vmatprep.subr.bf16.mxu0 0
        %552 = vmatpush1.bf16.msra.mxu0 %v521
        %553 = vmatprep.subr.bf16.mxu0 0
        %554 = vmatpush2.bf16.msra.mxu0 0
        %555 = vmatprep.subr.bf16.mxu0 0
        %556 = vmatpush2.bf16.msra.mxu0 0
        %557 = vmatprep.subr.bf16.mxu0 0
        %558 = vmatpush2.bf16.msra.mxu0 0
        %559 = vmatprep.subr.bf16.mxu0 0
        %560 = vmatpush2.bf16.msra.mxu0 0
        %561 = vmatprep.subr.bf16.mxu0 0
        %562 = vmatpush2.bf16.msra.mxu0 0
        %563 = vmatprep.subr.bf16.mxu0 0
        %564 = vmatpush2.bf16.msra.mxu0 0
        %565 = vmatprep.subr.bf16.mxu0 0
        %566 = vmatpush2.bf16.msra.mxu0 0
        %567 = vmatprep.subr.bf16.mxu0 0
        %568 = vmatpush2.bf16.msra.mxu0 0
        %569 = vmatprep.mubr.bf16.mxu0 0
        %570 = vmatmul.mubr.bf16.gmra.mxu0 %v472
        %v571 = vpop.f32.mrf.mxu0
        %v572 = vadd.f32 0.0, %v571
        %v573 = vpop.f32.mrf.mxu0
        %v574 = vpop.f32.mrf.mxu0
        %v575 = vpop.f32.mrf.mxu0
        %576 = vdwg.mxu0
        %v577 = vadd.f32 %v459, %v572
        %v578 = vld [vmem:[%s4] sm:$0x1]
        %v580 = vlaneseq
        %v581 = vshrl.u32 %v580, 7
        %v582 = vsub.s32 0, %v581
        %v583 = vrot.slane %v578, %v582
        %v585 = vadd.f32 %v577, %v583
        %586 = vadd.xlane.f32.xlu0 %v585
        %v587 = vpop.xlane.xlu0 %586
        %v588 = vmul.f32 %v587, 0.03125
        %v589 = vmul.f32 %v585, %v585
        %590 = vadd.xlane.f32.xlu0 %v589
        %v591 = vpop.xlane.xlu0 %590
        %v592 = vmul.f32 %v591, 0.03125
        %v593 = vmul.f32 %v588, %v588
        %v594 = vsub.f32 %v592, %v593
        %v595 = vmax.f32 %v594, 0.0
        %v596 = vsub.f32 %v585, %v588
        %v597 = vadd.f32 %v595, 1e-05
        %v598 = vrsqrt.pop %v597
        %v599 = vmul.f32 %v596, %v598
        %v600 = vld [vmem:[%s5] sm:$0x1]
        %v602 = vlaneseq
        %v603 = vshrl.u32 %v602, 7
        %v604 = vsub.s32 0, %v603
        %v605 = vrot.slane %v600, %v604
        %v607 = vmul.f32 %v599, %v605
        %v608 = vld [vmem:[%s6] sm:$0x1]
        %v610 = vlaneseq
        %v611 = vshrl.u32 %v610, 7
        %v612 = vsub.s32 0, %v611
        %v613 = vrot.slane %v608, %v612
        %v615 = vadd.f32 %v607, %v613
        %616 = vst [vmem:[%s322] sm:$0xff] %v615
        %s617 = sand.u32 %s185, 1
        %s618 = scalar_lea.sflag [#allocation4], %s617
        %s619 = sand.u32 %s185, 1
        %s620 = smul.addr %s619, 8
        %s621 = scalar_lea.vmem [#allocation8], %s620
        // Predicated region
        $region61: #{tpu_custom_call.1} parent=47 // pred_check
          %p622 = pneg %p195
        $region62: #{tpu_custom_call.1} parent=47 // pred_check_branch
          %624 = sbr.rel (%p622) target = $region64
        $region63: #{tpu_custom_call.1} parent=47 // pred_region
          %s626 = ssub.s32 128, 128
          %627 = vsyncadd %s618, %s626
          %s628 = smul.addr %s25, 128
          %s629 = scalar_lea.hbm %s7, %s628
          %s631 = sshll.u32 %s621, 4
          %s632 = int_to_ptr.vmem [resolvable:$true] %s631
          %634 = dma.vmem_to_hbm [thread:$0]  %s632, 128, %s629, %s618
        $region64: #{tpu_custom_call.1} parent=47 // pred_fallthru
          _
      $region48: #{tpu_custom_call.1} parent=5 // pred_fallthru
        _
      %p635 = scmp.le.s32.totalorder 2, %s20
      // Predicated region
      $region65: #{tpu_custom_call.1} parent=5 // pred_check
        %p636 = pneg %p635
      $region66: #{tpu_custom_call.1} parent=5 // pred_check_branch
        %638 = sbr.rel (%p636) target = $region68
      $region67: #{tpu_custom_call.1} parent=5 // pred_region
        %s639 = ssub.s32 %s20, 2
        // Predicated region
        $region69: #{tpu_custom_call.1} parent=67 // pred_check
          %p640 = pneg %p201
        $region70: #{tpu_custom_call.1} parent=67 // pred_check_branch
          %642 = sbr.rel (%p640) target = $region72
        $region71: #{tpu_custom_call.1} parent=67 // pred_region
          %s643 = sand.u32 %s186, 1
          %s644 = scalar_lea.sflag [#allocation4], %s643
          %s645 = sand.u32 %s186, 1
          %s646 = smul.addr %s645, 8
          %s647 = scalar_lea.vmem [#allocation8], %s646
          %648 = dma.done %s644, 128
        $region72: #{tpu_custom_call.1} parent=67 // pred_fallthru
          _
      $region68: #{tpu_custom_call.1} parent=5 // pred_fallthru
        _
    $region6: #{tpu_custom_call.1} parent=1 // loop_footer
      %s24 = sadd.s32 1, %s20
    $region7: #{tpu_custom_call.1} parent=1 // loop_footer_branch
      %19 = sbr.rel target = $region3
    $region8: #{tpu_custom_call.1} parent=1 // loop_exit
      _
    %649 = vsyncpa [#allocation3], 1
    %s650 = scalar_lea.sflag [#allocation3], 1
    %651 = vsyncpa %s650, 1
    %652 = vsyncpa [#allocation6], 1
    %653 = vsyncpa [#allocation4], 1
    %s654 = scalar_lea.sflag [#allocation4], 1
    %655 = vsyncpa %s654, 1

// kernel: tpu_custom_call.1
$region0: #{tpu_custom_call.1}
  #allocation0 [shape = 'u32[]', space=smem, size = 0x4, offset = 0x4, fixed_abs, tag = 'smem constant byte address 0x4 - core index']
  #allocation1 [shape = 'u32[144,128]{1,0:T(1,128)}', space=vmem, size = 0x12000, scoped, tag = 'internal scratch']
  %s0 = inlined_call_operand.hbm [shape: f32[16,128], index: 0, kind: input, shape index: {}]
  %s1 = inlined_call_operand.hbm [shape: bf16[128,256], index: 1, kind: input, shape index: {}]
  %s2 = inlined_call_operand.vmem [shape: f32[1,128], index: 2, kind: input, shape index: {}]
  %s3 = inlined_call_operand.hbm [shape: bf16[128,128], index: 3, kind: input, shape index: {}]
  %s4 = inlined_call_operand.vmem [shape: f32[1,128], index: 4, kind: input, shape index: {}]
  %s5 = inlined_call_operand.vmem [shape: f32[1,128], index: 5, kind: input, shape index: {}]
  %s6 = inlined_call_operand.vmem [shape: f32[1,128], index: 6, kind: input, shape index: {}]
  %s7 = inlined_call_operand.hbm [shape: f32[16,128], index: 7, kind: output, shape index: {}]
  %s8 = sld [smem:[#allocation0]]
  $region73: #{tpu_custom_call.1} parent=0
    _
  %s10 = ssub.s32 1, %s8
  %s11 = scalar_select 0, %s10, %s8
  $region1: #{tpu_custom_call.1} parent=0
    #allocation2 [shape = 'u8[8192]{0}', space=vmem, size = 0x2000, scoped, tag = 'input window, operand 0']
    #allocation3 [shape = 's32[2]{0}', space=sflag, size = 0x8, scoped, tag = 'scoped memory for tpu_custom_call.1']
    #allocation4 [shape = 's32[2]{0}', space=sflag, size = 0x8, scoped, tag = 'scoped memory for tpu_custom_call.1']
    #allocation5 [shape = 'u8[65536]{0}', space=vmem, size = 0x10000, scoped, tag = 'input window, operand 1, single buffered']
    #allocation6 [shape = 's32[1]{0}', space=sflag, size = 0x4, scoped, tag = 'scoped memory for tpu_custom_call.1']
    #allocation7 [shape = 'u8[32768]{0}', space=vmem, size = 0x8000, scoped, tag = 'input window, operand 3, single buffered']
    #allocation8 [shape = 'u8[8192]{0}', space=vmem, size = 0x2000, scoped, tag = 'output window, operand 0']
    %12 = vsyncpa [#allocation3], 0
    %s13 = scalar_lea.sflag [#allocation3], 1
    %14 = vsyncpa %s13, 0
    %15 = vsyncpa [#allocation6], 0
    %16 = vsyncpa [#allocation4], 0
    %s17 = scalar_lea.sflag [#allocation4], 1
    %18 = vsyncpa %s17, 0
    loop: start=0, step=1, limit=4
    $region2: #{tpu_custom_call.1} parent=1 // loop_pre_header
      _
    $region3: #{tpu_custom_call.1} parent=1 // loop_header
      %s20 = sphi 0, %s24
      %p21 = scmp.ge.s32.totalorder %s20, 4
      %s30 = sphi 0, %s32
      %s33 = sphi 0, %s30
      %s34 = sphi 0, %s33
      %s50 = sphi 0, %s34
      %s54 = sphi 0, %s54
      %s56 = sphi 0, %s54
      %s57 = sphi 0, %s56
      %s71 = sphi 0, %s57
      %s75 = sphi 0, %s75
      %s77 = sphi 0, %s75
      %s78 = sphi 0, %s77
      %s92 = sphi 0, %s78
      %s96 = sphi 0, %s96
      %s98 = sphi 0, %s96
      %s99 = sphi 0, %s98
      %s113 = sphi 0, %s99
      %s117 = sphi 0, %s117
      %s119 = sphi 0, %s117
      %s120 = sphi 0, %s119
      %s134 = sphi 0, %s120
      %s138 = sphi 0, %s138
      %s140 = sphi 0, %s138
      %s141 = sphi 0, %s140
      %s155 = sphi 0, %s141
      %s159 = sphi 0, %s159
      %s161 = sphi 0, %s159
      %s162 = sphi 0, %s161
      %s176 = sphi 0, %s162
      %s182 = sphi 0, %s184
      %s185 = sphi 0, %s182
      %s186 = sphi 0, %s185
      %s202 = sphi 0, %s186
    $region4: #{tpu_custom_call.1} parent=1 // loop_header_branch
      %23 = sbr.rel (%p21) target = $region8
    $region5: #{tpu_custom_call.1} parent=1 // loop_body
      %s25 = ssub.s32 %s20, 1
      %s26 = ssub.s32 %s20, 2
      %s27 = sadd.s32 %s20, 1
      %s28 = ssub.s32 %s20, %s27
      %p29 = scmp.eq.s32.totalorder %s28, 0
      %s31 = sadd.s32 %s30, 1
      %s32 = scalar_select %p29, %s30, %s31
      %p35 = pneg %p29
      %p36 = scmp.eq.s32.totalorder %s20, 1
      %p37 = por %p35, %p36
      %p38 = scmp.ne.s32.totalorder %s30, %s33
      %p39 = scmp.eq.s32.totalorder %s20, 0
      %p40 = por %p38, %p39
      %p41 = scmp.ne.s32.totalorder %s30, %s33
      %p42 = scmp.eq.s32.totalorder %s25, 1
      %p43 = por %p41, %p42
      %p44 = scmp.ne.s32.totalorder %s33, %s34
      %p45 = scmp.eq.s32.totalorder %s25, 0
      %p46 = por %p44, %p45
      %p47 = scmp.ne.s32.totalorder %s33, %s34
      %p48 = scmp.eq.s32.totalorder %s26, 1
      %p49 = por %p47, %p48
      %p51 = scmp.ne.s32.totalorder %s34, %s50
      %p52 = scmp.eq.s32.totalorder %s26, 0
      %p53 = por %p51, %p52
      %s55 = sadd.s32 %s54, 1
      %p58 = scmp.eq.s32.totalorder %s20, 1
      %p59 = scmp.ne.s32.totalorder %s54, %s56
      %p60 = scmp.eq.s32.totalorder %s20, 0
      %p61 = por %p59, %p60
      %p62 = scmp.ne.s32.totalorder %s54, %s56
      %p63 = scmp.eq.s32.totalorder %s25, 1
      %p64 = por %p62, %p63
      %p65 = scmp.ne.s32.totalorder %s56, %s57
      %p66 = scmp.eq.s32.totalorder %s25, 0
      %p67 = por %p65, %p66
      %p68 = scmp.ne.s32.totalorder %s56, %s57
      %p69 = scmp.eq.s32.totalorder %s26, 1
      %p70 = por %p68, %p69
      %p72 = scmp.ne.s32.totalorder %s57, %s71
      %p73 = scmp.eq.s32.totalorder %s26, 0
      %p74 = por %p72, %p73
      %s76 = sadd.s32 %s75, 1
      %p79 = scmp.eq.s32.totalorder %s20, 1
      %p80 = scmp.ne.s32.totalorder %s75, %s77
      %p81 = scmp.eq.s32.totalorder %s20, 0
      %p82 = por %p80, %p81
      %p83 = scmp.ne.s32.totalorder %s75, %s77
      %p84 = scmp.eq.s32.totalorder %s25, 1
      %p85 = por %p83, %p84
      %p86 = scmp.ne.s32.totalorder %s77, %s78
      %p87 = scmp.eq.s32.totalorder %s25, 0
      %p88 = por %p86, %p87
      %p89 = scmp.ne.s32.totalorder %s77, %s78
      %p90 = scmp.eq.s32.totalorder %s26, 1
      %p91 = por %p89, %p90
      %p93 = scmp.ne.s32.totalorder %s78, %s92
      %p94 = scmp.eq.s32.totalorder %s26, 0
      %p95 = por %p93, %p94
      %s97 = sadd.s32 %s96, 1
      %p100 = scmp.eq.s32.totalorder %s20, 1
      %p101 = scmp.ne.s32.totalorder %s96, %s98
      %p102 = scmp.eq.s32.totalorder %s20, 0
      %p103 = por %p101, %p102
      %p104 = scmp.ne.s32.totalorder %s96, %s98
      %p105 = scmp.eq.s32.totalorder %s25, 1
      %p106 = por %p104, %p105
      %p107 = scmp.ne.s32.totalorder %s98, %s99
      %p108 = scmp.eq.s32.totalorder %s25, 0
      %p109 = por %p107, %p108
      %p110 = scmp.ne.s32.totalorder %s98, %s99
      %p111 = scmp.eq.s32.totalorder %s26, 1
      %p112 = por %p110, %p111
      %p114 = scmp.ne.s32.totalorder %s99, %s113
      %p115 = scmp.eq.s32.totalorder %s26, 0
      %p116 = por %p114, %p115
      %s118 = sadd.s32 %s117, 1
      %p121 = scmp.eq.s32.totalorder %s20, 1
      %p122 = scmp.ne.s32.totalorder %s117, %s119
      %p123 = scmp.eq.s32.totalorder %s20, 0
      %p124 = por %p122, %p123
      %p125 = scmp.ne.s32.totalorder %s117, %s119
      %p126 = scmp.eq.s32.totalorder %s25, 1
      %p127 = por %p125, %p126
      %p128 = scmp.ne.s32.totalorder %s119, %s120
      %p129 = scmp.eq.s32.totalorder %s25, 0
      %p130 = por %p128, %p129
      %p131 = scmp.ne.s32.totalorder %s119, %s120
      %p132 = scmp.eq.s32.totalorder %s26, 1
      %p133 = por %p131, %p132
      %p135 = scmp.ne.s32.totalorder %s120, %s134
      %p136 = scmp.eq.s32.totalorder %s26, 0
      %p137 = por %p135, %p136
      %s139 = sadd.s32 %s138, 1
      %p142 = scmp.eq.s32.totalorder %s20, 1
      %p143 = scmp.ne.s32.totalorder %s138, %s140
      %p144 = scmp.eq.s32.totalorder %s20, 0
      %p145 = por %p143, %p144
      %p146 = scmp.ne.s32.totalorder %s138, %s140
      %p147 = scmp.eq.s32.totalorder %s25, 1
      %p148 = por %p146, %p147
      %p149 = scmp.ne.s32.totalorder %s140, %s141
      %p150 = scmp.eq.s32.totalorder %s25, 0
      %p151 = por %p149, %p150
      %p152 = scmp.ne.s32.totalorder %s140, %s141
      %p153 = scmp.eq.s32.totalorder %s26, 1
      %p154 = por %p152, %p153
      %p156 = scmp.ne.s32.totalorder %s141, %s155
      %p157 = scmp.eq.s32.totalorder %s26, 0
      %p158 = por %p156, %p157
      %s160 = sadd.s32 %s159, 1
      %p163 = scmp.eq.s32.totalorder %s20, 1
      %p164 = scmp.ne.s32.totalorder %s159, %s161
      %p165 = scmp.eq.s32.totalorder %s20, 0
      %p166 = por %p164, %p165
      %p167 = scmp.ne.s32.totalorder %s159, %s161
      %p168 = scmp.eq.s32.totalorder %s25, 1
      %p169 = por %p167, %p168
      %p170 = scmp.ne.s32.totalorder %s161, %s162
      %p171 = scmp.eq.s32.totalorder %s25, 0
      %p172 = por %p170, %p171
      %p173 = scmp.ne.s32.totalorder %s161, %s162
      %p174 = scmp.eq.s32.totalorder %s26, 1
      %p175 = por %p173, %p174
      %p177 = scmp.ne.s32.totalorder %s162, %s176
      %p178 = scmp.eq.s32.totalorder %s26, 0
      %p179 = por %p177, %p178
      %s180 = ssub.s32 %s20, %s27
      %p181 = scmp.eq.s32.totalorder %s180, 0
      %s183 = sadd.s32 %s182, 1
      %s184 = scalar_select %p181, %s182, %s183
      %p187 = pneg %p181
      %p188 = scmp.eq.s32.totalorder %s20, 1
      %p189 = por %p187, %p188
      %p190 = scmp.ne.s32.totalorder %s182, %s185
      %p191 = scmp.eq.s32.totalorder %s20, 0
      %p192 = por %p190, %p191
      %p193 = scmp.ne.s32.totalorder %s182, %s185
      %p194 = scmp.eq.s32.totalorder %s25, 1
      %p195 = por %p193, %p194
      %p196 = scmp.ne.s32.totalorder %s185, %s186
      %p197 = scmp.eq.s32.totalorder %s25, 0
      %p198 = por %p196, %p197
      %p199 = scmp.ne.s32.totalorder %s185, %s186
      %p200 = scmp.eq.s32.totalorder %s26, 1
      %p201 = por %p199, %p200
      %p203 = scmp.ne.s32.totalorder %s186, %s202
      %p204 = scmp.eq.s32.totalorder %s26, 0
      %p205 = por %p203, %p204
      %p206 = scmp.le.s32.totalorder 1, %s20
      %p207 = scmp.lt.s32.totalorder %s20, 3
      %p208 = pnand %p206, %p207
      %p209 = pneg %p208
      // Predicated region
      $region9: #{tpu_custom_call.1} parent=5 // pred_check
        _
      $region10: #{tpu_custom_call.1} parent=5 // pred_check_branch
        %211 = sbr.rel (%p208) target = $region12
      $region11: #{tpu_custom_call.1} parent=5 // pred_region
        %s212 = ssub.s32 %s20, 1
        // Predicated region
        $region13: #{tpu_custom_call.1} parent=11 // pred_check
          %p213 = pneg %p67
        $region14: #{tpu_custom_call.1} parent=11 // pred_check_branch
          %215 = sbr.rel (%p213) target = $region16
        $region15: #{tpu_custom_call.1} parent=11 // pred_region
          %s217 = ssub.s32 2048, 2048
          %218 = vsyncadd [#allocation6], %s217
          %s219 = sshll.u32 [#allocation5], 4
          %s220 = int_to_ptr.vmem [resolvable:$true] %s219
          %225 = dma.hbm_to_vmem [thread:$0]  %s1, 2048, %s220, [#allocation6], 128, 128, 8
        $region16: #{tpu_custom_call.1} parent=11 // pred_fallthru
          _
        // Predicated region
        $region17: #{tpu_custom_call.1} parent=11 // pred_check
          %p226 = pneg %p88
        $region18: #{tpu_custom_call.1} parent=11 // pred_check_branch
          %228 = sbr.rel (%p226) target = $region20
        $region19: #{tpu_custom_call.1} parent=11 // pred_region
          _
        $region20: #{tpu_custom_call.1} parent=11 // pred_fallthru
          _
        // Predicated region
        $region21: #{tpu_custom_call.1} parent=11 // pred_check
          %p229 = pneg %p109
        $region22: #{tpu_custom_call.1} parent=11 // pred_check_branch
          %231 = sbr.rel (%p229) target = $region24
        $region23: #{tpu_custom_call.1} parent=11 // pred_region
          %s233 = ssub.s32 1024, 1024
          %234 = vsyncadd [#allocation6], %s233
          %s235 = sshll.u32 [#allocation7], 4
          %s236 = int_to_ptr.vmem [resolvable:$true] %s235
          %241 = dma.hbm_to_vmem [thread:$0]  %s3, 1024, %s236, [#allocation6], 64, 64, 4
        $region24: #{tpu_custom_call.1} parent=11 // pred_fallthru
          _
        // Predicated region
        $region25: #{tpu_custom_call.1} parent=11 // pred_check
          %p242 = pneg %p130
        $region26: #{tpu_custom_call.1} parent=11 // pred_check_branch
          %244 = sbr.rel (%p242) target = $region28
        $region27: #{tpu_custom_call.1} parent=11 // pred_region
          _
        $region28: #{tpu_custom_call.1} parent=11 // pred_fallthru
          _
        // Predicated region
        $region29: #{tpu_custom_call.1} parent=11 // pred_check
          %p245 = pneg %p151
        $region30: #{tpu_custom_call.1} parent=11 // pred_check_branch
          %247 = sbr.rel (%p245) target = $region32
        $region31: #{tpu_custom_call.1} parent=11 // pred_region
          _
        $region32: #{tpu_custom_call.1} parent=11 // pred_fallthru
          _
        // Predicated region
        $region33: #{tpu_custom_call.1} parent=11 // pred_check
          %p248 = pneg %p172
        $region34: #{tpu_custom_call.1} parent=11 // pred_check_branch
          %250 = sbr.rel (%p248) target = $region36
        $region35: #{tpu_custom_call.1} parent=11 // pred_region
          _
        $region36: #{tpu_custom_call.1} parent=11 // pred_fallthru
          _
      $region12: #{tpu_custom_call.1} parent=5 // pred_fallthru
        _
      %p251 = scmp.lt.s32.totalorder %s20, 2
      // Predicated region
      $region37: #{tpu_custom_call.1} parent=5 // pred_check
        %p252 = pneg %p251
      $region38: #{tpu_custom_call.1} parent=5 // pred_check_branch
        %254 = sbr.rel (%p252) target = $region40
      $region39: #{tpu_custom_call.1} parent=5 // pred_region
        // Predicated region
        $region41: #{tpu_custom_call.1} parent=39 // pred_check
          %p255 = pneg %p40
        $region42: #{tpu_custom_call.1} parent=39 // pred_check_branch
          %257 = sbr.rel (%p255) target = $region44
        $region43: #{tpu_custom_call.1} parent=39 // pred_region
          %s258 = sand.u32 %s30, 1
          %s259 = scalar_lea.sflag [#allocation3], %s258
          %s260 = sand.u32 %s30, 1
          %s261 = smul.addr %s260, 8
          %s262 = scalar_lea.vmem [#allocation2], %s261
          %s264 = ssub.s32 128, 128
          %265 = vsyncadd %s259, %s264
          %s266 = smul.addr %s20, 128
          %s267 = scalar_lea.hbm %s0, %s266
          %s269 = sshll.u32 %s262, 4
          %s270 = int_to_ptr.vmem [resolvable:$true] %s269
          %272 = dma.hbm_to_vmem [thread:$0]  %s267, 128, %s270, %s259
        $region44: #{tpu_custom_call.1} parent=39 // pred_fallthru
          _
      $region40: #{tpu_custom_call.1} parent=5 // pred_fallthru
        _
      %p273 = scmp.le.s32.totalorder 1, %s20
      %p274 = scmp.lt.s32.totalorder %s20, 3
      %p275 = pnand %p273, %p274
      %p276 = pneg %p275
      // Predicated region
      $region45: #{tpu_custom_call.1} parent=5 // pred_check
        _
      $region46: #{tpu_custom_call.1} parent=5 // pred_check_branch
        %278 = sbr.rel (%p275) target = $region48
      $region47: #{tpu_custom_call.1} parent=5 // pred_region
        %s279 = ssub.s32 %s20, 1
        %s280 = sand.u32 %s33, 1
        %s281 = scalar_lea.sflag [#allocation3], %s280
        %s282 = sand.u32 %s33, 1
        %s283 = smul.addr %s282, 8
        %s284 = scalar_lea.vmem [#allocation2], %s283
        // Predicated region
        $region49: #{tpu_custom_call.1} parent=47 // pred_check
          %p285 = pneg %p46
        $region50: #{tpu_custom_call.1} parent=47 // pred_check_branch
          %287 = sbr.rel (%p285) target = $region52
        $region51: #{tpu_custom_call.1} parent=47 // pred_region
          %288 = dma.done %s281, 128
        $region52: #{tpu_custom_call.1} parent=47 // pred_fallthru
          _
        // Predicated region
        $region53: #{tpu_custom_call.1} parent=47 // pred_check
          %p289 = pneg %p67
        $region54: #{tpu_custom_call.1} parent=47 // pred_check_branch
          %291 = sbr.rel (%p289) target = $region56
        $region55: #{tpu_custom_call.1} parent=47 // pred_region
          %292 = dma.done [#allocation6], 2048
        $region56: #{tpu_custom_call.1} parent=47 // pred_fallthru
          _
        // Predicated region
        $region57: #{tpu_custom_call.1} parent=47 // pred_check
          %p293 = pneg %p109
        $region58: #{tpu_custom_call.1} parent=47 // pred_check_branch
          %295 = sbr.rel (%p293) target = $region60
        $region59: #{tpu_custom_call.1} parent=47 // pred_region
          %296 = dma.done [#allocation6], 1024
        $region60: #{tpu_custom_call.1} parent=47 // pred_fallthru
          _
        %s297 = sand.u32 %s33, 1
        %s298 = scalar_lea.sflag [#allocation3], %s297
        %s299 = sand.u32 %s33, 1
        %s300 = smul.addr %s299, 8
        %s301 = scalar_lea.vmem [#allocation2], %s300
        %p302 = pneg %p46
        %p303 = pneg %p43
        %p304 = pneg %p67
        %p305 = pneg %p64
        %p306 = pneg %p88
        %p307 = pneg %p85
        %p308 = pneg %p109
        %p309 = pneg %p106
        %p310 = pneg %p130
        %p311 = pneg %p127
        %p312 = pneg %p151
        %p313 = pneg %p148
        %p314 = pneg %p172
        %p315 = pneg %p169
        %p316 = pneg %p198
        %p317 = pneg %p195
        %s318 = sand.u32 %s185, 1
        %s319 = scalar_lea.sflag [#allocation4], %s318
        %s320 = sand.u32 %s185, 1
        %s321 = smul.addr %s320, 8
        %s322 = scalar_lea.vmem [#allocation8], %s321
        %v324 = vld [vmem:[%s284] sm:$0xff]
        %v325 = vpack.c.bf16 %v324, %v324
        %v326 = vld [vmem:[#allocation5] sm:$0xff]
        %v327 = vld [vmem:[#allocation5 + $0x8] sm:$0xff]
        %v328 = vld [vmem:[#allocation5 + $0x10] sm:$0xff]
        %v329 = vld [vmem:[#allocation5 + $0x18] sm:$0xff]
        %v330 = vld [vmem:[#allocation5 + $0x20] sm:$0xff]
        %v331 = vld [vmem:[#allocation5 + $0x28] sm:$0xff]
        %v332 = vld [vmem:[#allocation5 + $0x30] sm:$0xff]
        %v333 = vld [vmem:[#allocation5 + $0x38] sm:$0xff]
        %v334 = vld [vmem:[#allocation5 + $0x40] sm:$0xff]
        %v335 = vld [vmem:[#allocation5 + $0x48] sm:$0xff]
        %v336 = vld [vmem:[#allocation5 + $0x50] sm:$0xff]
        %v337 = vld [vmem:[#allocation5 + $0x58] sm:$0xff]
        %v338 = vld [vmem:[#allocation5 + $0x60] sm:$0xff]
        %v339 = vld [vmem:[#allocation5 + $0x68] sm:$0xff]
        %v340 = vld [vmem:[#allocation5 + $0x70] sm:$0xff]
        %v341 = vld [vmem:[#allocation5 + $0x78] sm:$0xff]
        %v358 = vunpack.c.l.b16 %v326
        %v359 = vunpack.c.h.b16 %v326
        %v360 = vunpack.c.l.b16 %v327
        %v361 = vunpack.c.h.b16 %v327
        %v362 = vunpack.c.l.b16 %v328
        %v363 = vunpack.c.h.b16 %v328
        %v364 = vunpack.c.l.b16 %v329
        %v365 = vunpack.c.h.b16 %v329
        %v366 = vunpack.c.l.b16 %v330
        %v367 = vunpack.c.h.b16 %v330
        %v368 = vunpack.c.l.b16 %v331
        %v369 = vunpack.c.h.b16 %v331
        %v370 = vunpack.c.l.b16 %v332
        %v371 = vunpack.c.h.b16 %v332
        %v372 = vunpack.c.l.b16 %v333
        %v373 = vunpack.c.h.b16 %v333
        %v374 = vunpack.c.l.b16 %v334
        %v375 = vunpack.c.h.b16 %v334
        %v376 = vunpack.c.l.b16 %v335
        %v377 = vunpack.c.h.b16 %v335
        %v378 = vunpack.c.l.b16 %v336
        %v379 = vunpack.c.h.b16 %v336
        %v380 = vunpack.c.l.b16 %v337
        %v381 = vunpack.c.h.b16 %v337
        %v382 = vunpack.c.l.b16 %v338
        %v383 = vunpack.c.h.b16 %v338
        %v384 = vunpack.c.l.b16 %v339
        %v385 = vunpack.c.h.b16 %v339
        %v386 = vunpack.c.l.b16 %v340
        %v387 = vunpack.c.h.b16 %v340
        %v388 = vunpack.c.l.b16 %v341
        %v389 = vunpack.c.h.b16 %v341
        %v390 = vpack.c.b16 %v360, %v358
        %v391 = vpack.c.b16 %v361, %v359
        %v392 = vpack.c.b16 %v364, %v362
        %v393 = vpack.c.b16 %v365, %v363
        %v394 = vpack.c.b16 %v368, %v366
        %v395 = vpack.c.b16 %v369, %v367
        %v396 = vpack.c.b16 %v372, %v370
        %v397 = vpack.c.b16 %v373, %v371
        %v398 = vpack.c.b16 %v376, %v374
        %v399 = vpack.c.b16 %v377, %v375
        %v400 = vpack.c.b16 %v380, %v378
        %v401 = vpack.c.b16 %v381, %v379
        %v402 = vpack.c.b16 %v384, %v382
        %v403 = vpack.c.b16 %v385, %v383
        %v404 = vpack.c.b16 %v388, %v386
        %v405 = vpack.c.b16 %v389, %v387
        %422 = vmatprep.subr.bf16.mxu0 %v405
        %423 = vmatpush1.bf16.msra.mxu0 %v404
        %424 = vmatprep.subr.bf16.mxu0 %v403
        %425 = vmatpush1.bf16.msra.mxu0 %v402
        %426 = vmatprep.subr.bf16.mxu0 %v401
        %427 = vmatpush1.bf16.msra.mxu0 %v400
        %428 = vmatprep.subr.bf16.mxu0 %v399
        %429 = vmatpush1.bf16.msra.mxu0 %v398
        %430 = vmatprep.subr.bf16.mxu0 %v397
        %431 = vmatpush1.bf16.msra.mxu0 %v396
        %432 = vmatprep.subr.bf16.mxu0 %v395
        %433 = vmatpush1.bf16.msra.mxu0 %v394
        %434 = vmatprep.subr.bf16.mxu0 %v393
        %435 = vmatpush1.bf16.msra.mxu0 %v392
        %436 = vmatprep.subr.bf16.mxu0 %v391
        %437 = vmatpush1.bf16.msra.mxu0 %v390
        %438 = vmatprep.subr.bf16.mxu0 0
        %439 = vmatpush2.bf16.msra.mxu0 0
        %440 = vmatprep.subr.bf16.mxu0 0
        %441 = vmatpush2.bf16.msra.mxu0 0
        %442 = vmatprep.subr.bf16.mxu0 0
        %443 = vmatpush2.bf16.msra.mxu0 0
        %444 = vmatprep.subr.bf16.mxu0 0
        %445 = vmatpush2.bf16.msra.mxu0 0
        %446 = vmatprep.subr.bf16.mxu0 0
        %447 = vmatpush2.bf16.msra.mxu0 0
        %448 = vmatprep.subr.bf16.mxu0 0
        %449 = vmatpush2.bf16.msra.mxu0 0
        %450 = vmatprep.subr.bf16.mxu0 0
        %451 = vmatpush2.bf16.msra.mxu0 0
        %452 = vmatprep.subr.bf16.mxu0 0
        %453 = vmatpush2.bf16.msra.mxu0 0
        %454 = vmatprep.mubr.bf16.mxu0 0
        %455 = vmatmul.mubr.bf16.gmra.mxu0 %v325
        %v456 = vpop.f32.mrf.mxu0
        %v457 = vadd.f32 0.0, %v456
        %v458 = vpop.f32.mrf.mxu0
        %v459 = vadd.f32 0.0, %v458
        %v460 = vpop.f32.mrf.mxu0
        %v461 = vpop.f32.mrf.mxu0
        %462 = vdwg.mxu0
        %v463 = vld [vmem:[%s2] sm:$0x1]
        %v465 = vlaneseq
        %v466 = vshrl.u32 %v465, 7
        %v467 = vsub.s32 0, %v466
        %v468 = vrot.slane %v463, %v467
        %v470 = vadd.f32 %v457, %v468
        %v471 = vmax.f32 %v470, 0.0
        %v472 = vpack.c.bf16 %v471, %v471
        %v473 = vld [vmem:[#allocation7] sm:$0xf]
        %v474 = vld [vmem:[#allocation7 + $0x4] sm:$0xf]
        %v475 = vld [vmem:[#allocation7 + $0x8] sm:$0xf]
        %v476 = vld [vmem:[#allocation7 + $0xc] sm:$0xf]
        %v477 = vld [vmem:[#allocation7 + $0x10] sm:$0xf]
        %v478 = vld [vmem:[#allocation7 + $0x14] sm:$0xf]
        %v479 = vld [vmem:[#allocation7 + $0x18] sm:$0xf]
        %v480 = vld [vmem:[#allocation7 + $0x1c] sm:$0xf]
        %v481 = vld [vmem:[#allocation7 + $0x20] sm:$0xf]
        %v482 = vld [vmem:[#allocation7 + $0x24] sm:$0xf]
        %v483 = vld [vmem:[#allocation7 + $0x28] sm:$0xf]
        %v484 = vld [vmem:[#allocation7 + $0x2c] sm:$0xf]
        %v485 = vld [vmem:[#allocation7 + $0x30] sm:$0xf]
        %v486 = vld [vmem:[#allocation7 + $0x34] sm:$0xf]
        %v487 = vld [vmem:[#allocation7 + $0x38] sm:$0xf]
        %v488 = vld [vmem:[#allocation7 + $0x3c] sm:$0xf]
        %v505 = vunpack.c.l.b16 %v473
        %v506 = vunpack.c.l.b16 %v474
        %v507 = vunpack.c.l.b16 %v475
        %v508 = vunpack.c.l.b16 %v476
        %v509 = vunpack.c.l.b16 %v477
        %v510 = vunpack.c.l.b16 %v478
        %v511 = vunpack.c.l.b16 %v479
        %v512 = vunpack.c.l.b16 %v480
        %v513 = vunpack.c.l.b16 %v481
        %v514 = vunpack.c.l.b16 %v482
        %v515 = vunpack.c.l.b16 %v483
        %v516 = vunpack.c.l.b16 %v484
        %v517 = vunpack.c.l.b16 %v485
        %v518 = vunpack.c.l.b16 %v486
        %v519 = vunpack.c.l.b16 %v487
        %v520 = vunpack.c.l.b16 %v488
        %v521 = vpack.c.b16 %v506, %v505
        %v522 = vpack.c.b16 %v508, %v507
        %v523 = vpack.c.b16 %v510, %v509
        %v524 = vpack.c.b16 %v512, %v511
        %v525 = vpack.c.b16 %v514, %v513
        %v526 = vpack.c.b16 %v516, %v515
        %v527 = vpack.c.b16 %v518, %v517
        %v528 = vpack.c.b16 %v520, %v519
        %537 = vmatprep.subr.bf16.mxu0 0
        %538 = vmatpush1.bf16.msra.mxu0 %v528
        %539 = vmatprep.subr.bf16.mxu0 0
        %540 = vmatpush1.bf16.msra.mxu0 %v527
        %541 = vmatprep.subr.bf16.mxu0 0
        %542 = vmatpush1.bf16.msra.mxu0 %v526
        %543 = vmatprep.subr.bf16.mxu0 0
        %544 = vmatpush1.bf16.msra.mxu0 %v525
        %545 = vmatprep.subr.bf16.mxu0 0
        %546 = vmatpush1.bf16.msra.mxu0 %v524
        %547 = vmatprep.subr.bf16.mxu0 0
        %548 = vmatpush1.bf16.msra.mxu0 %v523
        %549 = vmatprep.subr.bf16.mxu0 0
        %550 = vmatpush1.bf16.msra.mxu0 %v522
        %551 = vmatprep.subr.bf16.mxu0 0
        %552 = vmatpush1.bf16.msra.mxu0 %v521
        %553 = vmatprep.subr.bf16.mxu0 0
        %554 = vmatpush2.bf16.msra.mxu0 0
        %555 = vmatprep.subr.bf16.mxu0 0
        %556 = vmatpush2.bf16.msra.mxu0 0
        %557 = vmatprep.subr.bf16.mxu0 0
        %558 = vmatpush2.bf16.msra.mxu0 0
        %559 = vmatprep.subr.bf16.mxu0 0
        %560 = vmatpush2.bf16.msra.mxu0 0
        %561 = vmatprep.subr.bf16.mxu0 0
        %562 = vmatpush2.bf16.msra.mxu0 0
        %563 = vmatprep.subr.bf16.mxu0 0
        %564 = vmatpush2.bf16.msra.mxu0 0
        %565 = vmatprep.subr.bf16.mxu0 0
        %566 = vmatpush2.bf16.msra.mxu0 0
        %567 = vmatprep.subr.bf16.mxu0 0
        %568 = vmatpush2.bf16.msra.mxu0 0
        %569 = vmatprep.mubr.bf16.mxu0 0
        %570 = vmatmul.mubr.bf16.gmra.mxu0 %v472
        %v571 = vpop.f32.mrf.mxu0
        %v572 = vadd.f32 0.0, %v571
        %v573 = vpop.f32.mrf.mxu0
        %v574 = vpop.f32.mrf.mxu0
        %v575 = vpop.f32.mrf.mxu0
        %576 = vdwg.mxu0
        %v577 = vadd.f32 %v459, %v572
        %v578 = vld [vmem:[%s4] sm:$0x1]
        %v580 = vlaneseq
        %v581 = vshrl.u32 %v580, 7
        %v582 = vsub.s32 0, %v581
        %v583 = vrot.slane %v578, %v582
        %v585 = vadd.f32 %v577, %v583
        %586 = vadd.xlane.f32.xlu0 %v585
        %v587 = vpop.xlane.xlu0 %586
        %v588 = vmul.f32 %v587, 0.03125
        %v589 = vmul.f32 %v585, %v585
        %590 = vadd.xlane.f32.xlu0 %v589
        %v591 = vpop.xlane.xlu0 %590
        %v592 = vmul.f32 %v591, 0.03125
        %v593 = vmul.f32 %v588, %v588
        %v594 = vsub.f32 %v592, %v593
        %v595 = vmax.f32 %v594, 0.0
        %v596 = vsub.f32 %v585, %v588
        %v597 = vadd.f32 %v595, 1e-05
        %v598 = vrsqrt.pop %v597
        %v599 = vmul.f32 %v596, %v598
        %v600 = vld [vmem:[%s5] sm:$0x1]
        %v602 = vlaneseq
        %v603 = vshrl.u32 %v602, 7
        %v604 = vsub.s32 0, %v603
        %v605 = vrot.slane %v600, %v604
        %v607 = vmul.f32 %v599, %v605
        %v608 = vld [vmem:[%s6] sm:$0x1]
        %v610 = vlaneseq
        %v611 = vshrl.u32 %v610, 7
        %v612 = vsub.s32 0, %v611
        %v613 = vrot.slane %v608, %v612
        %v615 = vadd.f32 %v607, %v613
        %616 = vst [vmem:[%s322] sm:$0xff] %v615
        %s617 = sand.u32 %s185, 1
        %s618 = scalar_lea.sflag [#allocation4], %s617
        %s619 = sand.u32 %s185, 1
        %s620 = smul.addr %s619, 8
        %s621 = scalar_lea.vmem [#allocation8], %s620
        // Predicated region
        $region61: #{tpu_custom_call.1} parent=47 // pred_check
          %p622 = pneg %p195
        $region62: #{tpu_custom_call.1} parent=47 // pred_check_branch
          %624 = sbr.rel (%p622) target = $region64
        $region63: #{tpu_custom_call.1} parent=47 // pred_region
          %s626 = ssub.s32 128, 128
          %627 = vsyncadd %s618, %s626
          %s628 = smul.addr %s25, 128
          %s629 = scalar_lea.hbm %s7, %s628
          %s631 = sshll.u32 %s621, 4
          %s632 = int_to_ptr.vmem [resolvable:$true] %s631
          %634 = dma.vmem_to_hbm [thread:$0]  %s632, 128, %s629, %s618
        $region64: #{tpu_custom_call.1} parent=47 // pred_fallthru
          _
      $region48: #{tpu_custom_call.1} parent=5 // pred_fallthru
        _
      %p635 = scmp.le.s32.totalorder 2, %s20
      // Predicated region
      $region65: #{tpu_custom_call.1} parent=5 // pred_check
        %p636 = pneg %p635
      $region66: #{tpu_custom_call.1} parent=5 // pred_check_branch
        %638 = sbr.rel (%p636) target = $region68
      $region67: #{tpu_custom_call.1} parent=5 // pred_region
        %s639 = ssub.s32 %s20, 2
        // Predicated region
        $region69: #{tpu_custom_call.1} parent=67 // pred_check
          %p640 = pneg %p201
        $region70: #{tpu_custom_call.1} parent=67 // pred_check_branch
          %642 = sbr.rel (%p640) target = $region72
        $region71: #{tpu_custom_call.1} parent=67 // pred_region
          %s643 = sand.u32 %s186, 1
          %s644 = scalar_lea.sflag [#allocation4], %s643
          %s645 = sand.u32 %s186, 1
          %s646 = smul.addr %s645, 8
          %s647 = scalar_lea.vmem [#allocation8], %s646
          %648 = dma.done %s644, 128
        $region72: #{tpu_custom_call.1} parent=67 // pred_fallthru
          _
      $region68: #{tpu_custom_call.1} parent=5 // pred_fallthru
        _
    $region6: #{tpu_custom_call.1} parent=1 // loop_footer
      %s24 = sadd.s32 1, %s20
    $region7: #{tpu_custom_call.1} parent=1 // loop_footer_branch
      %19 = sbr.rel target = $region3
    $region8: #{tpu_custom_call.1} parent=1 // loop_exit
      _
    %649 = vsyncpa [#allocation3], 1
    %s650 = scalar_lea.sflag [#allocation3], 1
    %651 = vsyncpa %s650, 1
    %652 = vsyncpa [#allocation6], 1
    %653 = vsyncpa [#allocation4], 1
    %s654 = scalar_lea.sflag [#allocation4], 1
    %655 = vsyncpa %s654, 1

</llo_original>
